<compile_context>
chip_gen: v7x
topology: tpu7x:2x2x1
jax: 0.10.0
libtpu: 0.0.40
codegen_flags: <defaults>
</compile_context>

<pallas_src>
import functools

import jax
import jax.numpy as jnp
from jax import lax
from jax.experimental import pallas as pl
from jax.experimental.pallas import tpu as pltpu


# ----------------------------- Pallas kernels ------------------------------ #

def _encode_proj_last_kernel(adj_ref, x_ref, w_ref, z_ref):
    """z_blk = relu((adj_blk @ X) @ W)  -- used when feature_dim <= enc_dim."""
    ax = jnp.dot(adj_ref[...], x_ref[...], preferred_element_type=jnp.float32)
    axw = jnp.dot(ax.astype(w_ref.dtype), w_ref[...],
                  preferred_element_type=jnp.float32)
    z_ref[...] = jnp.maximum(axw, 0.0)


def _encode_proj_first_kernel(adj_ref, xw_ref, z_ref):
    """z_blk = relu(adj_blk @ XW)  -- used when feature_dim > enc_dim."""
    z = jnp.dot(adj_ref[...], xw_ref[...], preferred_element_type=jnp.float32)
    z_ref[...] = jnp.maximum(z, 0.0)


def _a_pred_kernel(zi_ref, zj_ref, out_ref):
    """out_blk = sigmoid(z_i @ z_j.T) without materializing a transpose."""
    logits = lax.dot_general(
        zi_ref[...], zj_ref[...],
        dimension_numbers=(((1,), (1,)), ((), ())),   # contract last dims
        preferred_element_type=jnp.float32)
    out_ref[...] = jax.nn.sigmoid(logits)             # exp/recip on the EUP


# ------------------------------- Helpers ------------------------------------ #

def _pick_tile(dim, pref, align):
    """Largest tile <= pref that divides `dim` and is a multiple of `align`.

    Falls back to the full dimension (always a legal block shape)."""
    if dim <= pref:
        return dim
    t = (min(pref, dim) // align) * align
    while t >= align:
        if dim % t == 0:
            return t
        t -= align
    return dim


def _normalize_rows(y):
    """Row-wise min/max normalize then divide by row sum (matches torch code).

    NOTE: a constant row yields 0/0 -> NaN exactly like the PyTorch original;
    semantics are kept intentionally."""
    row_min = jnp.min(y, axis=1, keepdims=True)
    row_max = jnp.max(y, axis=1, keepdims=True)
    y_std = (y - row_min) / (row_max - row_min)
    return y_std / jnp.sum(y_std, axis=1, keepdims=True)


_VMEM_LIMIT = 64 * 1024 * 1024


def _encode(x, adj, w, *, tile_rows, mxu_dtype):
    """z = relu(adj @ (x @ w)), row-tiled over the node dimension."""
    n, f = x.shape
    d = w.shape[1]
    tm = _pick_tile(n, tile_rows, 8)

    adj_c = adj.astype(mxu_dtype)
    cparams = pltpu.CompilerParams(dimension_semantics=("parallel",),
                                   vmem_limit_bytes=_VMEM_LIMIT)

    if f <= d:
        # Cheaper association: contract the feature dim first.
        kernel = _encode_proj_last_kernel
        args = (adj_c, x.astype(mxu_dtype), w.astype(mxu_dtype))
        in_specs = [
            pl.BlockSpec((tm, n), lambda i: (i, 0)),
            pl.BlockSpec((n, f), lambda i: (0, 0)),
            pl.BlockSpec((f, d), lambda i: (0, 0)),
        ]
    else:
        # Pre-project X once (tiny (n,f)@(f,d) in XLA), feed the kernel XW.
        xw = jnp.dot(x, w, preferred_element_type=jnp.float32).astype(mxu_dtype)
        kernel = _encode_proj_first_kernel
        args = (adj_c, xw)
        in_specs = [
            pl.BlockSpec((tm, n), lambda i: (i, 0)),
            pl.BlockSpec((n, d), lambda i: (0, 0)),
        ]

    return pl.pallas_call(
        kernel,
        out_shape=jax.ShapeDtypeStruct((n, d), jnp.float32),
        grid=(n // tm,),
        in_specs=in_specs,
        out_specs=pl.BlockSpec((tm, d), lambda i: (i, 0)),
        compiler_params=cparams,
    )(*args)


def _a_pred(z, *, tile_m, tile_n, mxu_dtype):
    """A_pred = sigmoid(z @ z.T), tiled over a 2-D parallel grid."""
    n, d = z.shape
    tm = _pick_tile(n, tile_m, 8)
    tn = _pick_tile(n, tile_n, 128)

    z_c = z.astype(mxu_dtype)
    itemsize = jnp.dtype(mxu_dtype).itemsize
    cost = pl.CostEstimate(
        flops=2 * n * n * d,
        transcendentals=n * n,
        bytes_accessed=2 * n * d * itemsize + n * n * 4)

    return pl.pallas_call(
        _a_pred_kernel,
        out_shape=jax.ShapeDtypeStruct((n, n), jnp.float32),
        grid=(n // tm, n // tn),
        in_specs=[pl.BlockSpec((tm, d), lambda i, j: (i, 0)),
                  pl.BlockSpec((tn, d), lambda i, j: (j, 0))],
        out_specs=pl.BlockSpec((tm, tn), lambda i, j: (i, j)),
        compiler_params=pltpu.CompilerParams(
            dimension_semantics=("parallel", "parallel"),
            vmem_limit_bytes=_VMEM_LIMIT),
        cost_estimate=cost,
    )(z_c, z_c)


# ------------------------------- Forward ------------------------------------ #

@functools.partial(
    jax.jit,
    static_argnames=("with_indicator", "use_bf16", "tile_rows", "tile_m", "tile_n"))
def _gaemf_forward_jit(x, adj, w, cpinv, with_indicator, use_bf16,
                       tile_rows, tile_m, tile_n):
    mxu_dtype = jnp.bfloat16 if use_bf16 else jnp.float32

    z = _encode(x, adj, w, tile_rows=tile_rows, mxu_dtype=mxu_dtype)
    a_pred = _a_pred(z, tile_m=tile_m, tile_n=tile_n, mxu_dtype=mxu_dtype)

    if with_indicator:
        # Indicator is O(n * n_cluster) with n_cluster << 128 lanes: keep it in
        # plain XLA to avoid masked narrow-lane stores inside a Pallas kernel.
        zc = jnp.dot(z, cpinv, preferred_element_type=jnp.float32)
        indicator = _normalize_rows(zc)
        return a_pred, z, indicator
    return a_pred, z, None


def gaemf_forward(x, adj, w, cluster_centroid, flag, *, cpinv=None,
                  use_bf16=True, tile_rows=256, tile_m=512, tile_n=512):
    """Mirrors GAEMF.forward(_input, flag)."""
    with_indicator = (not isinstance(flag, bool)) or (flag is True)
    if with_indicator and cpinv is None:
        # Hoisted out of the fused hot path; callers can cache this across
        # steps since centroids change rarely.
        # TODO(synk): torch.linalg.pinv (SVD) has no Pallas TPU equivalent;
        #             computed with jnp.linalg.pinv in XLA.
        cpinv = jnp.linalg.pinv(cluster_centroid)
    return _gaemf_forward_jit(x, adj, w, cpinv if with_indicator else None,
                              with_indicator=with_indicator, use_bf16=use_bf16,
                              tile_rows=tile_rows, tile_m=tile_m, tile_n=tile_n)


# --------------------------- Parameter builders ----------------------------- #

def glorot_init(key, in_dim, out_dim):
    """Matches the GAE `glorot_init`: U(-r, r), r = sqrt(6/(in+out))."""
    init_range = jnp.sqrt(6.0 / (in_dim + out_dim))
    return jax.random.uniform(key, (in_dim, out_dim), jnp.float32,
                              minval=-init_range, maxval=init_range)


def make_normalized_adj(key, n):
    """Symmetric normalized adjacency D^-1/2 (A + I) D^-1/2 of a random graph."""
    a = (jax.random.uniform(key, (n, n)) > 0.5).astype(jnp.float32)
    a = jnp.maximum(a, a.T)
    a = a + jnp.eye(n, dtype=jnp.float32)
    d = jnp.sum(a, axis=1)
    d_inv_sqrt = 1.0 / jnp.sqrt(d)
    return a * d_inv_sqrt[:, None] * d_inv_sqrt[None, :]


def _reference_forward(x, adj, w, cluster_centroid, with_indicator):
    """Pure-JAX f32 reference mirroring the PyTorch forward."""
    z = jnp.maximum(adj @ (x @ w), 0.0)
    a_pred = jax.nn.sigmoid(z @ z.T)
    if with_indicator:
        ind = _normalize_rows(z @ jnp.linalg.pinv(cluster_centroid))
        return a_pred, z, ind
    return a_pred, z, None


# --------------------------------- Main ------------------------------------ #

if __name__ == "__main__":
    # Small but grid-exercising problem: 256 nodes, 32 input features,
    # encoded_space_dim=64, n_cluster=8; 128-tiles -> 2x2 A_pred grid.
    n_nodes = 256
    feature_dim = 32
    encoded_space_dim = 64
    n_cluster = 8
    tiles = dict(tile_rows=128, tile_m=128, tile_n=128)

    key = jax.random.PRNGKey(0)
    k_x, k_adj, k_w, k_c = jax.random.split(key, 4)

    x = jax.random.normal(k_x, (n_nodes, feature_dim), jnp.float32)
    adj = make_normalized_adj(k_adj, n_nodes)
    w = glorot_init(k_w, feature_dim, encoded_space_dim)          # GCN weight
    cluster_centroid = glorot_init(k_c, n_cluster, encoded_space_dim)

    a_exp, z_exp, ind_exp = _reference_forward(x, adj, w, cluster_centroid, True)

    # f32 MXU path -- tight numerical check against the reference.
    a1, z1, ind1 = gaemf_forward(x, adj, w, cluster_centroid, True,
                                 use_bf16=False, **tiles)
    jax.block_until_ready((a1, z1, ind1))
    assert a1.shape == (n_nodes, n_nodes)
    assert z1.shape == (n_nodes, encoded_space_dim)
    assert ind1.shape == (n_nodes, n_cluster)
    assert jnp.allclose(a1, a_exp, atol=1e-4, rtol=1e-4)
    assert jnp.allclose(z1, z_exp, atol=1e-4, rtol=1e-4)
    assert jnp.allclose(ind1, ind_exp, atol=1e-4, rtol=1e-4)
    assert jnp.allclose(jnp.sum(ind1, axis=1), 1.0, atol=1e-5)

    # Default bf16-MXU perf path (f32 accumulation) -- loose check.
    a2, z2, ind2 = gaemf_forward(x, adj, w, cluster_centroid, True, **tiles)
    jax.block_until_ready((a2, z2, ind2))
    assert jnp.allclose(a2, a_exp, atol=5e-2, rtol=5e-2)
    assert jnp.allclose(z2, z_exp, atol=5e-2, rtol=5e-2)
    assert jnp.allclose(jnp.sum(ind2, axis=1), 1.0, atol=1e-4)

    # flag=False branch (A_pred, z, None).
    a3, z3, ind3 = gaemf_forward(x, adj, w, cluster_centroid, False, **tiles)
    jax.block_until_ready((a3, z3))
    assert a3.shape == (n_nodes, n_nodes)
    assert z3.shape == (n_nodes, encoded_space_dim)
    assert ind3 is None

    print("KERNEL_OK")
</pallas_src>

<mosaic_0001>
module attributes {stable_mosaic.version = 11 : i64} {
  func.func @_encode_proj_last_kernel(%arg0: i32, %arg1: memref<128x256xf32, #tpu.memory_space<vmem>>, %arg2: memref<256x32xf32, #tpu.memory_space<vmem>>, %arg3: memref<32x64xf32, #tpu.memory_space<vmem>>, %arg4: memref<128x64xf32, #tpu.memory_space<vmem>>) attributes {dimension_semantics = [#tpu.dimension_semantics<parallel>], iteration_bounds = array<i64: 2>, scalar_prefetch = 0 : i64, scratch_operands = 0 : i64, tpu.core_type = #tpu.core_type<tc>, window_params = [{transform_indices = @transform_0, window_bounds = array<i64: 128, 256>}, {pipeline_mode = #tpu.pipeline_mode<synchronous>, transform_indices = @transform_1, window_bounds = array<i64: 256, 32>}, {pipeline_mode = #tpu.pipeline_mode<synchronous>, transform_indices = @transform_2, window_bounds = array<i64: 32, 64>}, {transform_indices = @transform_3, window_bounds = array<i64: 128, 64>}]} {
    %c0 = arith.constant 0 : index
    %c0_0 = arith.constant 0 : index
    %0 = vector.load %arg1[%c0, %c0_0] : memref<128x256xf32, #tpu.memory_space<vmem>>, vector<128x256xf32>
    %c0_1 = arith.constant 0 : index
    %c0_2 = arith.constant 0 : index
    %1 = vector.load %arg2[%c0_1, %c0_2] : memref<256x32xf32, #tpu.memory_space<vmem>>, vector<256x32xf32>
    %cst = arith.constant dense<0.000000e+00> : vector<128x32xf32>
    %2 = tpu.matmul %0, %1, %cst {dimension_numbers = #tpu.dot_dimension_numbers<[1], [0], [0], [1], [0, 0, 1, 1], [], []>} : vector<128x256xf32>, vector<256x32xf32>, vector<128x32xf32> -> vector<128x32xf32>
    %c0_3 = arith.constant 0 : index
    %c0_4 = arith.constant 0 : index
    %3 = vector.load %arg3[%c0_3, %c0_4] : memref<32x64xf32, #tpu.memory_space<vmem>>, vector<32x64xf32>
    %cst_5 = arith.constant dense<0.000000e+00> : vector<128x64xf32>
    %4 = tpu.matmul %2, %3, %cst_5 {dimension_numbers = #tpu.dot_dimension_numbers<[1], [0], [0], [1], [0, 0, 1, 1], [], []>} : vector<128x32xf32>, vector<32x64xf32>, vector<128x64xf32> -> vector<128x64xf32>
    %cst_6 = arith.constant 0.000000e+00 : f32
    %5 = vector.broadcast %cst_6 : f32 to vector<128x64xf32>
    %6 = arith.maximumf %4, %5 : vector<128x64xf32>
    %c0_7 = arith.constant 0 : index
    %c0_8 = arith.constant 0 : index
    %7 = vector.load %arg4[%c0_7, %c0_8] : memref<128x64xf32, #tpu.memory_space<vmem>>, vector<128x64xf32>
    tpu.vector_store %arg4[%c0_7, %c0_8], %6 {strides = array<i32>} : memref<128x64xf32, #tpu.memory_space<vmem>>, vector<128x64xf32>,
    return
  }
  func.func @transform_0(%arg0: i32) -> (i32, i32) {
    %c0_i32 = arith.constant 0 : i32
    %c0_i32_0 = arith.constant 0 : i32
    return %arg0, %c0_i32 : i32, i32
  }
  func.func @transform_1(%arg0: i32) -> (i32, i32) {
    %c0_i32 = arith.constant 0 : i32
    %c0_i32_0 = arith.constant 0 : i32
    %c0_i32_1 = arith.constant 0 : i32
    return %c0_i32, %c0_i32_0 : i32, i32
  }
  func.func @transform_2(%arg0: i32) -> (i32, i32) {
    %c0_i32 = arith.constant 0 : i32
    %c0_i32_0 = arith.constant 0 : i32
    %c0_i32_1 = arith.constant 0 : i32
    return %c0_i32, %c0_i32_0 : i32, i32
  }
  func.func @transform_3(%arg0: i32) -> (i32, i32) {
    %c0_i32 = arith.constant 0 : i32
    %c0_i32_0 = arith.constant 0 : i32
    return %arg0, %c0_i32 : i32, i32
  }
}

module attributes {stable_mosaic.version = 11 : i64} {
  func.func @_a_pred_kernel(%arg0: i32, %arg1: i32, %arg2: memref<128x64xf32, #tpu.memory_space<vmem>>, %arg3: memref<128x64xf32, #tpu.memory_space<vmem>>, %arg4: memref<128x128xf32, #tpu.memory_space<vmem>>) attributes {dimension_semantics = [#tpu.dimension_semantics<parallel>, #tpu.dimension_semantics<parallel>], iteration_bounds = array<i64: 2, 2>, scalar_prefetch = 0 : i64, scratch_operands = 0 : i64, tpu.core_type = #tpu.core_type<tc>, window_params = [{transform_indices = @transform_0, window_bounds = array<i64: 128, 64>}, {transform_indices = @transform_1, window_bounds = array<i64: 128, 64>}, {transform_indices = @transform_2, window_bounds = array<i64: 128, 128>}]} {
    %c0 = arith.constant 0 : index
    %c0_0 = arith.constant 0 : index
    %0 = vector.load %arg2[%c0, %c0_0] : memref<128x64xf32, #tpu.memory_space<vmem>>, vector<128x64xf32>
    %c0_1 = arith.constant 0 : index
    %c0_2 = arith.constant 0 : index
    %1 = vector.load %arg3[%c0_1, %c0_2] : memref<128x64xf32, #tpu.memory_space<vmem>>, vector<128x64xf32>
    %cst = arith.constant dense<0.000000e+00> : vector<128x128xf32>
    %2 = tpu.matmul %0, %1, %cst {dimension_numbers = #tpu.dot_dimension_numbers<[1], [1], [0], [0], [0, 0, 1, 0], [], []>} : vector<128x64xf32>, vector<128x64xf32>, vector<128x128xf32> -> vector<128x128xf32>
    %3 = arith.negf %2 : vector<128x128xf32>
    %4 = math.exp %3 : vector<128x128xf32>
    %cst_3 = arith.constant 1.000000e+00 : f32
    %5 = vector.broadcast %cst_3 : f32 to vector<128x128xf32>
    %6 = arith.addf %5, %4 : vector<128x128xf32>
    %7 = arith.divf %5, %6 : vector<128x128xf32>
    %c0_4 = arith.constant 0 : index
    %c0_5 = arith.constant 0 : index
    %8 = vector.load %arg4[%c0_4, %c0_5] : memref<128x128xf32, #tpu.memory_space<vmem>>, vector<128x128xf32>
    tpu.vector_store %arg4[%c0_4, %c0_5], %7 {strides = array<i32>} : memref<128x128xf32, #tpu.memory_space<vmem>>, vector<128x128xf32>,
    return
  }
  func.func @transform_0(%arg0: i32, %arg1: i32) -> (i32, i32) {
    %c0_i32 = arith.constant 0 : i32
    %c0_i32_0 = arith.constant 0 : i32
    return %arg0, %c0_i32 : i32, i32
  }
  func.func @transform_1(%arg0: i32, %arg1: i32) -> (i32, i32) {
    %c0_i32 = arith.constant 0 : i32
    %c0_i32_0 = arith.constant 0 : i32
    return %arg1, %c0_i32 : i32, i32
  }
  func.func @transform_2(%arg0: i32, %arg1: i32) -> (i32, i32) {
    %c0_i32 = arith.constant 0 : i32
    return %arg0, %arg1 : i32, i32
  }
}

</mosaic_0001>

<llo_original>
// kernel: sub.4
$region0: #{sub.4}
  #allocation0 [shape = 's32[1]{0}', space=sflag, size = 0x4, scoped, tag = 'scoped memory for sub.4']
  %s0 = inlined_call_operand.vmem [shape: f32[256], index: 0, kind: input, shape index: {}]
  %s1 = inlined_call_operand.vmem [shape: f32[256], index: 1, kind: input, shape index: {}]
  %s2 = inlined_call_operand.vmem [shape: f32[256], index: 2, kind: output, shape index: {}]
  %v3 = vld [vmem:[%s0] sm:$0x3]
  %v4 = vld [vmem:[%s1] sm:$0x3]
  %5 = xla_tuple %v3, %v4
  %6 = xla_tuple %5
  %v7 = vsub.f32 %v3, %v4
  %8 = xla_tuple %v7
  %9 = vst [vmem:[%s2] sm:$0x3] %v7

// kernel: _gaemf_forward_jit.3
$region0: #{_gaemf_forward_jit.3}
  #allocation0 [shape = 'u32[]', space=smem, size = 0x4, offset = 0x4, fixed_abs, tag = 'smem constant byte address 0x4 - core index']
  #allocation1 [shape = 'u32[144,128]{1,0:T(1,128)}', space=vmem, size = 0x12000, scoped, tag = 'internal scratch']
  %s0 = inlined_call_operand.hbm [shape: f32[256,64], index: 0, kind: input, shape index: {}, may-alias: {0,1}]
  %s1 = inlined_call_operand.hbm [shape: f32[256,64], index: 1, kind: input, shape index: {}, may-alias: {0,1}]
  %s2 = inlined_call_operand.hbm [shape: f32[256,256], index: 2, kind: output, shape index: {}]
  %s3 = sld [smem:[#allocation0]]
  $region49: #{_gaemf_forward_jit.3} parent=0
    _
  %s5 = ssub.s32 1, %s3
  %s6 = scalar_select 0, %s5, %s3
  $region1: #{_gaemf_forward_jit.3} parent=0
    #allocation2 [shape = 'u8[131072]{0}', space=vmem, size = 0x20000, scoped, tag = 'input window, operand 0']
    #allocation3 [shape = 's32[2]{0}', space=sflag, size = 0x8, scoped, tag = 'scoped memory for _gaemf_forward_jit.3']
    #allocation4 [shape = 's32[2]{0}', space=sflag, size = 0x8, scoped, tag = 'scoped memory for _gaemf_forward_jit.3']
    #allocation5 [shape = 'u8[131072]{0}', space=vmem, size = 0x20000, scoped, tag = 'input window, operand 1']
    #allocation6 [shape = 's32[2]{0}', space=sflag, size = 0x8, scoped, tag = 'scoped memory for _gaemf_forward_jit.3']
    #allocation7 [shape = 'u8[131072]{0}', space=vmem, size = 0x20000, scoped, tag = 'output window, operand 0']
    %7 = vsyncpa [#allocation3], 0
    %s8 = scalar_lea.sflag [#allocation3], 1
    %9 = vsyncpa %s8, 0
    %10 = vsyncpa [#allocation6], 0
    %s11 = scalar_lea.sflag [#allocation6], 1
    %12 = vsyncpa %s11, 0
    %13 = vsyncpa [#allocation4], 0
    %s14 = scalar_lea.sflag [#allocation4], 1
    %15 = vsyncpa %s14, 0
    loop: start=0, step=1, limit=6
    $region2: #{_gaemf_forward_jit.3} parent=1 // loop_pre_header
      _
    $region3: #{_gaemf_forward_jit.3} parent=1 // loop_header
      %s17 = sphi 0, %s21
      %p18 = scmp.ge.s32.totalorder %s17, 6
      %s24 = sphi 0, %s36
      %s25 = sphi 0, %s32
      %s26 = sphi 0, %s24
      %s27 = sphi 0, %s25
      %s28 = sphi 0, %s26
      %s29 = sphi 0, %s27
      %s39 = sphi 0, %s41
      %s42 = sphi 0, %s39
      %s43 = sphi 0, %s42
      %s59 = sphi 0, %s43
      %s65 = sphi 0, %s67
      %s68 = sphi 0, %s65
      %s69 = sphi 0, %s68
      %s85 = sphi 0, %s69
      %s93 = sphi 0, %s95
      %s96 = sphi 0, %s93
      %s97 = sphi 0, %s96
      %s113 = sphi 0, %s97
    $region4: #{_gaemf_forward_jit.3} parent=1 // loop_header_branch
      %20 = sbr.rel (%p18) target = $region8
    $region5: #{_gaemf_forward_jit.3} parent=1 // loop_body
      %s22 = ssub.s32 %s17, 1
      %s23 = ssub.s32 %s17, 2
      %s30 = sadd.s32 1, %s25
      %p31 = scmp.ge.s32.totalorder %s30, 2
      %s32 = scalar_select %p31, 0, %s30
      %s33 = sadd.s32 1, %s24
      %s34 = scalar_select %p31, %s33, %s24
      %p35 = scmp.ge.s32.totalorder %s34, 2
      %s36 = scalar_select %p35, 0, %s34
      %s37 = ssub.s32 %s24, %s36
      %p38 = scmp.eq.s32.totalorder %s37, 0
      %s40 = sadd.s32 %s39, 1
      %s41 = scalar_select %p38, %s39, %s40
      %p44 = pneg %p38
      %p45 = scmp.eq.s32.totalorder %s17, 3
      %p46 = por %p44, %p45
      %p47 = scmp.ne.s32.totalorder %s39, %s42
      %p48 = scmp.eq.s32.totalorder %s17, 0
      %p49 = por %p47, %p48
      %p50 = scmp.ne.s32.totalorder %s39, %s42
      %p51 = scmp.eq.s32.totalorder %s22, 3
      %p52 = por %p50, %p51
      %p53 = scmp.ne.s32.totalorder %s42, %s43
      %p54 = scmp.eq.s32.totalorder %s22, 0
      %p55 = por %p53, %p54
      %p56 = scmp.ne.s32.totalorder %s42, %s43
      %p57 = scmp.eq.s32.totalorder %s23, 3
      %p58 = por %p56, %p57
      %p60 = scmp.ne.s32.totalorder %s43, %s59
      %p61 = scmp.eq.s32.totalorder %s23, 0
      %p62 = por %p60, %p61
      %s63 = ssub.s32 %s25, %s32
      %p64 = scmp.eq.s32.totalorder %s63, 0
      %s66 = sadd.s32 %s65, 1
      %s67 = scalar_select %p64, %s65, %s66
      %p70 = pneg %p64
      %p71 = scmp.eq.s32.totalorder %s17, 3
      %p72 = por %p70, %p71
      %p73 = scmp.ne.s32.totalorder %s65, %s68
      %p74 = scmp.eq.s32.totalorder %s17, 0
      %p75 = por %p73, %p74
      %p76 = scmp.ne.s32.totalorder %s65, %s68
      %p77 = scmp.eq.s32.totalorder %s22, 3
      %p78 = por %p76, %p77
      %p79 = scmp.ne.s32.totalorder %s68, %s69
      %p80 = scmp.eq.s32.totalorder %s22, 0
      %p81 = por %p79, %p80
      %p82 = scmp.ne.s32.totalorder %s68, %s69
      %p83 = scmp.eq.s32.totalorder %s23, 3
      %p84 = por %p82, %p83
      %p86 = scmp.ne.s32.totalorder %s69, %s85
      %p87 = scmp.eq.s32.totalorder %s23, 0
      %p88 = por %p86, %p87
      %s89 = ssub.s32 %s24, %s36
      %s90 = ssub.s32 %s25, %s32
      %s91 = sor.u32 %s89, %s90
      %p92 = scmp.eq.s32.totalorder %s91, 0
      %s94 = sadd.s32 %s93, 1
      %s95 = scalar_select %p92, %s93, %s94
      %p98 = pneg %p92
      %p99 = scmp.eq.s32.totalorder %s17, 3
      %p100 = por %p98, %p99
      %p101 = scmp.ne.s32.totalorder %s93, %s96
      %p102 = scmp.eq.s32.totalorder %s17, 0
      %p103 = por %p101, %p102
      %p104 = scmp.ne.s32.totalorder %s93, %s96
      %p105 = scmp.eq.s32.totalorder %s22, 3
      %p106 = por %p104, %p105
      %p107 = scmp.ne.s32.totalorder %s96, %s97
      %p108 = scmp.eq.s32.totalorder %s22, 0
      %p109 = por %p107, %p108
      %p110 = scmp.ne.s32.totalorder %s96, %s97
      %p111 = scmp.eq.s32.totalorder %s23, 3
      %p112 = por %p110, %p111
      %p114 = scmp.ne.s32.totalorder %s97, %s113
      %p115 = scmp.eq.s32.totalorder %s23, 0
      %p116 = por %p114, %p115
      %p117 = scmp.le.s32.totalorder 1, %s17
      %p118 = scmp.lt.s32.totalorder %s17, 5
      %p119 = pnand %p117, %p118
      %p120 = pneg %p119
      // Predicated region
      $region9: #{_gaemf_forward_jit.3} parent=5 // pred_check
        _
      $region10: #{_gaemf_forward_jit.3} parent=5 // pred_check_branch
        %122 = sbr.rel (%p119) target = $region12
      $region11: #{_gaemf_forward_jit.3} parent=5 // pred_region
        %s123 = ssub.s32 %s17, 1
      $region12: #{_gaemf_forward_jit.3} parent=5 // pred_fallthru
        _
      %p124 = scmp.lt.s32.totalorder %s17, 4
      // Predicated region
      $region13: #{_gaemf_forward_jit.3} parent=5 // pred_check
        %p125 = pneg %p124
      $region14: #{_gaemf_forward_jit.3} parent=5 // pred_check_branch
        %127 = sbr.rel (%p125) target = $region16
      $region15: #{_gaemf_forward_jit.3} parent=5 // pred_region
        // Predicated region
        $region17: #{_gaemf_forward_jit.3} parent=15 // pred_check
          %p128 = pneg %p49
        $region18: #{_gaemf_forward_jit.3} parent=15 // pred_check_branch
          %130 = sbr.rel (%p128) target = $region20
        $region19: #{_gaemf_forward_jit.3} parent=15 // pred_region
          %s131 = sand.u32 %s39, 1
          %s132 = scalar_lea.sflag [#allocation3], %s131
          %s133 = sand.u32 %s39, 1
          %s134 = smul.addr %s133, 128
          %s135 = scalar_lea.vmem [#allocation2], %s134
          %s136 = smul.u32 16, %s24
          %s138 = ssub.s32 2048, 2048
          %139 = vsyncadd %s132, %s138
          %s140 = smul.addr %s136, 128
          %s141 = scalar_lea.hbm %s0, %s140
          %s142 = sshll.u32 %s135, 4
          %s143 = int_to_ptr.vmem [resolvable:$true] %s142
          %148 = dma.hbm_to_vmem [thread:$0]  %s141, 2048, %s143, %s132, 128, 128, 8
        $region20: #{_gaemf_forward_jit.3} parent=15 // pred_fallthru
          _
        // Predicated region
        $region21: #{_gaemf_forward_jit.3} parent=15 // pred_check
          %p149 = pneg %p75
        $region22: #{_gaemf_forward_jit.3} parent=15 // pred_check_branch
          %151 = sbr.rel (%p149) target = $region24
        $region23: #{_gaemf_forward_jit.3} parent=15 // pred_region
          %s152 = sand.u32 %s65, 1
          %s153 = scalar_lea.sflag [#allocation6], %s152
          %s154 = sand.u32 %s65, 1
          %s155 = smul.addr %s154, 128
          %s156 = scalar_lea.vmem [#allocation5], %s155
          %s157 = smul.u32 16, %s25
          %s159 = ssub.s32 2048, 2048
          %160 = vsyncadd %s153, %s159
          %s161 = smul.addr %s157, 128
          %s162 = scalar_lea.hbm %s1, %s161
          %s163 = sshll.u32 %s156, 4
          %s164 = int_to_ptr.vmem [resolvable:$true] %s163
          %169 = dma.hbm_to_vmem [thread:$0]  %s162, 2048, %s164, %s153, 128, 128, 8
        $region24: #{_gaemf_forward_jit.3} parent=15 // pred_fallthru
          _
      $region16: #{_gaemf_forward_jit.3} parent=5 // pred_fallthru
        _
      %p170 = scmp.le.s32.totalorder 1, %s17
      %p171 = scmp.lt.s32.totalorder %s17, 5
      %p172 = pnand %p170, %p171
      %p173 = pneg %p172
      // Predicated region
      $region25: #{_gaemf_forward_jit.3} parent=5 // pred_check
        _
      $region26: #{_gaemf_forward_jit.3} parent=5 // pred_check_branch
        %175 = sbr.rel (%p172) target = $region28
      $region27: #{_gaemf_forward_jit.3} parent=5 // pred_region
        %s176 = ssub.s32 %s17, 1
        %s177 = sand.u32 %s42, 1
        %s178 = scalar_lea.sflag [#allocation3], %s177
        %s179 = sand.u32 %s42, 1
        %s180 = smul.addr %s179, 128
        %s181 = scalar_lea.vmem [#allocation2], %s180
        // Predicated region
        $region29: #{_gaemf_forward_jit.3} parent=27 // pred_check
          %p182 = pneg %p55
        $region30: #{_gaemf_forward_jit.3} parent=27 // pred_check_branch
          %184 = sbr.rel (%p182) target = $region32
        $region31: #{_gaemf_forward_jit.3} parent=27 // pred_region
          %185 = dma.done %s178, 2048
        $region32: #{_gaemf_forward_jit.3} parent=27 // pred_fallthru
          _
        %s186 = sand.u32 %s68, 1
        %s187 = scalar_lea.sflag [#allocation6], %s186
        %s188 = sand.u32 %s68, 1
        %s189 = smul.addr %s188, 128
        %s190 = scalar_lea.vmem [#allocation5], %s189
        // Predicated region
        $region33: #{_gaemf_forward_jit.3} parent=27 // pred_check
          %p191 = pneg %p81
        $region34: #{_gaemf_forward_jit.3} parent=27 // pred_check_branch
          %193 = sbr.rel (%p191) target = $region36
        $region35: #{_gaemf_forward_jit.3} parent=27 // pred_region
          %194 = dma.done %s187, 2048
        $region36: #{_gaemf_forward_jit.3} parent=27 // pred_fallthru
          _
        %s195 = sand.u32 %s42, 1
        %s196 = scalar_lea.sflag [#allocation3], %s195
        %s197 = sand.u32 %s42, 1
        %s198 = smul.addr %s197, 128
        %s199 = scalar_lea.vmem [#allocation2], %s198
        %p200 = pneg %p55
        %p201 = pneg %p52
        %s202 = sand.u32 %s68, 1
        %s203 = scalar_lea.sflag [#allocation6], %s202
        %s204 = sand.u32 %s68, 1
        %s205 = smul.addr %s204, 128
        %s206 = scalar_lea.vmem [#allocation5], %s205
        %p207 = pneg %p81
        %p208 = pneg %p78
        %p209 = pneg %p109
        %p210 = pneg %p106
        %s211 = sand.u32 %s96, 1
        %s212 = scalar_lea.sflag [#allocation4], %s211
        %s213 = sand.u32 %s96, 1
        %s214 = smul.addr %s213, 128
        %s215 = scalar_lea.vmem [#allocation7], %s214
        %s216 = smul.u32 16, %s26
        %s217 = smul.u32 16, %s27
        %s218 = smul.u32 16, %s26
        %v219 = vld [vmem:[%s181] sm:$0xff]
        %v220 = vld [vmem:[%s181 + $0x8] sm:$0xff]
        %v221 = vld [vmem:[%s181 + $0x10] sm:$0xff]
        %v222 = vld [vmem:[%s181 + $0x18] sm:$0xff]
        %v223 = vld [vmem:[%s181 + $0x20] sm:$0xff]
        %v224 = vld [vmem:[%s181 + $0x28] sm:$0xff]
        %v225 = vld [vmem:[%s181 + $0x30] sm:$0xff]
        %v226 = vld [vmem:[%s181 + $0x38] sm:$0xff]
        %v227 = vld [vmem:[%s181 + $0x40] sm:$0xff]
        %v228 = vld [vmem:[%s181 + $0x48] sm:$0xff]
        %v229 = vld [vmem:[%s181 + $0x50] sm:$0xff]
        %v230 = vld [vmem:[%s181 + $0x58] sm:$0xff]
        %v231 = vld [vmem:[%s181 + $0x60] sm:$0xff]
        %v232 = vld [vmem:[%s181 + $0x68] sm:$0xff]
        %v233 = vld [vmem:[%s181 + $0x70] sm:$0xff]
        %v234 = vld [vmem:[%s181 + $0x78] sm:$0xff]
        %v235 = vld [vmem:[%s190] sm:$0xff]
        %v236 = vld [vmem:[%s190 + $0x8] sm:$0xff]
        %v237 = vld [vmem:[%s190 + $0x10] sm:$0xff]
        %v238 = vld [vmem:[%s190 + $0x18] sm:$0xff]
        %v239 = vld [vmem:[%s190 + $0x20] sm:$0xff]
        %v240 = vld [vmem:[%s190 + $0x28] sm:$0xff]
        %v241 = vld [vmem:[%s190 + $0x30] sm:$0xff]
        %v242 = vld [vmem:[%s190 + $0x38] sm:$0xff]
        %v243 = vld [vmem:[%s190 + $0x40] sm:$0xff]
        %v244 = vld [vmem:[%s190 + $0x48] sm:$0xff]
        %v245 = vld [vmem:[%s190 + $0x50] sm:$0xff]
        %v246 = vld [vmem:[%s190 + $0x58] sm:$0xff]
        %v247 = vld [vmem:[%s190 + $0x60] sm:$0xff]
        %v248 = vld [vmem:[%s190 + $0x68] sm:$0xff]
        %v249 = vld [vmem:[%s190 + $0x70] sm:$0xff]
        %v250 = vld [vmem:[%s190 + $0x78] sm:$0xff]
        %vm251 = vcmask 523264
        %v253 = vsel %vm251, %v219, 0
        %v256 = vsel %vm251, %v220, 0
        %v259 = vsel %vm251, %v221, 0
        %v262 = vsel %vm251, %v222, 0
        %v265 = vsel %vm251, %v223, 0
        %v268 = vsel %vm251, %v224, 0
        %v271 = vsel %vm251, %v225, 0
        %v274 = vsel %vm251, %v226, 0
        %v277 = vsel %vm251, %v227, 0
        %v280 = vsel %vm251, %v228, 0
        %v283 = vsel %vm251, %v229, 0
        %v286 = vsel %vm251, %v230, 0
        %v289 = vsel %vm251, %v231, 0
        %v292 = vsel %vm251, %v232, 0
        %v295 = vsel %vm251, %v233, 0
        %v298 = vsel %vm251, %v234, 0
        %v301 = vsel %vm251, %v235, 0
        %v304 = vsel %vm251, %v236, 0
        %v307 = vsel %vm251, %v237, 0
        %v310 = vsel %vm251, %v238, 0
        %v313 = vsel %vm251, %v239, 0
        %v316 = vsel %vm251, %v240, 0
        %v319 = vsel %vm251, %v241, 0
        %v322 = vsel %vm251, %v242, 0
        %v325 = vsel %vm251, %v243, 0
        %v328 = vsel %vm251, %v244, 0
        %v331 = vsel %vm251, %v245, 0
        %v334 = vsel %vm251, %v246, 0
        %v337 = vsel %vm251, %v247, 0
        %v340 = vsel %vm251, %v248, 0
        %v343 = vsel %vm251, %v249, 0
        %v346 = vsel %vm251, %v250, 0
        %348 = vmatprep.subr.mxu0 0.0
        %349 = vmatpush1.xpose.msra.mxu0 %v301
        %350 = vmatprep.subr.mxu0 0.0
        %351 = vmatpush1.xpose.msra.mxu0 %v304
        %352 = vmatprep.subr.mxu0 0.0
        %353 = vmatpush1.xpose.msra.mxu0 %v307
        %354 = vmatprep.subr.mxu0 0.0
        %355 = vmatpush1.xpose.msra.mxu0 %v310
        %356 = vmatprep.subr.mxu0 0.0
        %357 = vmatpush1.xpose.msra.mxu0 %v313
        %358 = vmatprep.subr.mxu0 0.0
        %359 = vmatpush1.xpose.msra.mxu0 %v316
        %360 = vmatprep.subr.mxu0 0.0
        %361 = vmatpush1.xpose.msra.mxu0 %v319
        %362 = vmatprep.subr.mxu0 0.0
        %363 = vmatpush1.xpose.msra.mxu0 %v322
        %364 = vmatprep.subr.mxu0 0.0
        %365 = vmatpush1.xpose.msra.mxu0 %v325
        %366 = vmatprep.subr.mxu0 0.0
        %367 = vmatpush1.xpose.msra.mxu0 %v328
        %368 = vmatprep.subr.mxu0 0.0
        %369 = vmatpush1.xpose.msra.mxu0 %v331
        %370 = vmatprep.subr.mxu0 0.0
        %371 = vmatpush1.xpose.msra.mxu0 %v334
        %372 = vmatprep.subr.mxu0 0.0
        %373 = vmatpush1.xpose.msra.mxu0 %v337
        %374 = vmatprep.subr.mxu0 0.0
        %375 = vmatpush1.xpose.msra.mxu0 %v340
        %376 = vmatprep.subr.mxu0 0.0
        %377 = vmatpush1.xpose.msra.mxu0 %v343
        %378 = vmatprep.subr.mxu0 0.0
        %379 = vmatpush1.xpose.msra.mxu0 %v346
        %380 = vmatprep.subr.mxu0 0.0
        %381 = vmatpush1.xpose.msra.mxu0 0.0
        %382 = vmatprep.subr.mxu0 0.0
        %383 = vmatpush1.xpose.msra.mxu0 0.0
        %384 = vmatprep.subr.mxu0 0.0
        %385 = vmatpush1.xpose.msra.mxu0 0.0
        %386 = vmatprep.subr.mxu0 0.0
        %387 = vmatpush1.xpose.msra.mxu0 0.0
        %388 = vmatprep.subr.mxu0 0.0
        %389 = vmatpush1.xpose.msra.mxu0 0.0
        %390 = vmatprep.subr.mxu0 0.0
        %391 = vmatpush1.xpose.msra.mxu0 0.0
        %392 = vmatprep.subr.mxu0 0.0
        %393 = vmatpush1.xpose.msra.mxu0 0.0
        %394 = vmatprep.subr.mxu0 0.0
        %395 = vmatpush1.xpose.msra.mxu0 0.0
        %396 = vmatprep.subr.mxu0 0.0
        %397 = vmatpush1.xpose.msra.mxu0 0.0
        %398 = vmatprep.subr.mxu0 0.0
        %399 = vmatpush1.xpose.msra.mxu0 0.0
        %400 = vmatprep.subr.mxu0 0.0
        %401 = vmatpush1.xpose.msra.mxu0 0.0
        %402 = vmatprep.subr.mxu0 0.0
        %403 = vmatpush1.xpose.msra.mxu0 0.0
        %404 = vmatprep.subr.mxu0 0.0
        %405 = vmatpush1.xpose.msra.mxu0 0.0
        %406 = vmatprep.subr.mxu0 0.0
        %407 = vmatpush1.xpose.msra.mxu0 0.0
        %408 = vmatprep.subr.mxu0 0.0
        %409 = vmatpush1.xpose.msra.mxu0 0.0
        %410 = vmatprep.subr.mxu0 0.0
        %411 = vmatpush1.xpose.msra.mxu0 0.0
        %412 = vmatprep.mubr.f32.mxu0 0.0
        %413 = vmatmul.mubr.f32.gmra.mrb[0].mxu0 %v253
        %v414 = vpop.f32.mrb[0].mxu0
        %v415 = vadd.f32 0.0, %v414
        %v416 = vpop.f32.mrb[0].mxu0
        %417 = vmatprep.mubr.f32.mxu0 0.0
        %418 = vmatmul.mubr.f32.gmra.mrb[0].mxu0 %v256
        %v419 = vpop.f32.mrb[0].mxu0
        %v420 = vadd.f32 0.0, %v419
        %v421 = vpop.f32.mrb[0].mxu0
        %422 = vmatprep.mubr.f32.mxu0 0.0
        %423 = vmatmul.mubr.f32.gmra.mrb[0].mxu0 %v259
        %v424 = vpop.f32.mrb[0].mxu0
        %v425 = vadd.f32 0.0, %v424
        %v426 = vpop.f32.mrb[0].mxu0
        %427 = vmatprep.mubr.f32.mxu0 0.0
        %428 = vmatmul.mubr.f32.gmra.mrb[0].mxu0 %v262
        %v429 = vpop.f32.mrb[0].mxu0
        %v430 = vadd.f32 0.0, %v429
        %v431 = vpop.f32.mrb[0].mxu0
        %432 = vmatprep.mubr.f32.mxu0 0.0
        %433 = vmatmul.mubr.f32.gmra.mrb[0].mxu0 %v265
        %v434 = vpop.f32.mrb[0].mxu0
        %v435 = vadd.f32 0.0, %v434
        %v436 = vpop.f32.mrb[0].mxu0
        %437 = vmatprep.mubr.f32.mxu0 0.0
        %438 = vmatmul.mubr.f32.gmra.mrb[0].mxu0 %v268
        %v439 = vpop.f32.mrb[0].mxu0
        %v440 = vadd.f32 0.0, %v439
        %v441 = vpop.f32.mrb[0].mxu0
        %442 = vmatprep.mubr.f32.mxu0 0.0
        %443 = vmatmul.mubr.f32.gmra.mrb[0].mxu0 %v271
        %v444 = vpop.f32.mrb[0].mxu0
        %v445 = vadd.f32 0.0, %v444
        %v446 = vpop.f32.mrb[0].mxu0
        %447 = vmatprep.mubr.f32.mxu0 0.0
        %448 = vmatmul.mubr.f32.gmra.mrb[0].mxu0 %v274
        %v449 = vpop.f32.mrb[0].mxu0
        %v450 = vadd.f32 0.0, %v449
        %v451 = vpop.f32.mrb[0].mxu0
        %452 = vmatprep.mubr.f32.mxu0 0.0
        %453 = vmatmul.mubr.f32.gmra.mrb[0].mxu0 %v277
        %v454 = vpop.f32.mrb[0].mxu0
        %v455 = vadd.f32 0.0, %v454
        %v456 = vpop.f32.mrb[0].mxu0
        %457 = vmatprep.mubr.f32.mxu0 0.0
        %458 = vmatmul.mubr.f32.gmra.mrb[0].mxu0 %v280
        %v459 = vpop.f32.mrb[0].mxu0
        %v460 = vadd.f32 0.0, %v459
        %v461 = vpop.f32.mrb[0].mxu0
        %462 = vmatprep.mubr.f32.mxu0 0.0
        %463 = vmatmul.mubr.f32.gmra.mrb[0].mxu0 %v283
        %v464 = vpop.f32.mrb[0].mxu0
        %v465 = vadd.f32 0.0, %v464
        %v466 = vpop.f32.mrb[0].mxu0
        %467 = vmatprep.mubr.f32.mxu0 0.0
        %468 = vmatmul.mubr.f32.gmra.mrb[0].mxu0 %v286
        %v469 = vpop.f32.mrb[0].mxu0
        %v470 = vadd.f32 0.0, %v469
        %v471 = vpop.f32.mrb[0].mxu0
        %472 = vmatprep.mubr.f32.mxu0 0.0
        %473 = vmatmul.mubr.f32.gmra.mrb[0].mxu0 %v289
        %v474 = vpop.f32.mrb[0].mxu0
        %v475 = vadd.f32 0.0, %v474
        %v476 = vpop.f32.mrb[0].mxu0
        %477 = vmatprep.mubr.f32.mxu0 0.0
        %478 = vmatmul.mubr.f32.gmra.mrb[0].mxu0 %v292
        %v479 = vpop.f32.mrb[0].mxu0
        %v480 = vadd.f32 0.0, %v479
        %v481 = vpop.f32.mrb[0].mxu0
        %482 = vmatprep.mubr.f32.mxu0 0.0
        %483 = vmatmul.mubr.f32.gmra.mrb[0].mxu0 %v295
        %v484 = vpop.f32.mrb[0].mxu0
        %v485 = vadd.f32 0.0, %v484
        %v486 = vpop.f32.mrb[0].mxu0
        %487 = vmatprep.mubr.f32.mxu0 0.0
        %488 = vmatmul.mubr.f32.gmra.mrb[0].mxu0 %v298
        %v489 = vpop.f32.mrb[0].mxu0
        %v490 = vadd.f32 0.0, %v489
        %v491 = vpop.f32.mrb[0].mxu0
        %492 = vdwg.mxu0
        %v493 = vxor.u32 %v415, 2147483648
        %v494 = vxor.u32 %v420, 2147483648
        %v495 = vxor.u32 %v425, 2147483648
        %v496 = vxor.u32 %v430, 2147483648
        %v497 = vxor.u32 %v435, 2147483648
        %v498 = vxor.u32 %v440, 2147483648
        %v499 = vxor.u32 %v445, 2147483648
        %v500 = vxor.u32 %v450, 2147483648
        %v501 = vxor.u32 %v455, 2147483648
        %v502 = vxor.u32 %v460, 2147483648
        %v503 = vxor.u32 %v465, 2147483648
        %v504 = vxor.u32 %v470, 2147483648
        %v505 = vxor.u32 %v475, 2147483648
        %v506 = vxor.u32 %v480, 2147483648
        %v507 = vxor.u32 %v485, 2147483648
        %v508 = vxor.u32 %v490, 2147483648
        %v509 = vmul.f32 %v493, 1.442695
        %v510 = vpow.pop %v509
        %v511 = vmul.f32 %v494, 1.442695
        %v512 = vpow.pop %v511
        %v513 = vmul.f32 %v495, 1.442695
        %v514 = vpow.pop %v513
        %v515 = vmul.f32 %v496, 1.442695
        %v516 = vpow.pop %v515
        %v517 = vmul.f32 %v497, 1.442695
        %v518 = vpow.pop %v517
        %v519 = vmul.f32 %v498, 1.442695
        %v520 = vpow.pop %v519
        %v521 = vmul.f32 %v499, 1.442695
        %v522 = vpow.pop %v521
        %v523 = vmul.f32 %v500, 1.442695
        %v524 = vpow.pop %v523
        %v525 = vmul.f32 %v501, 1.442695
        %v526 = vpow.pop %v525
        %v527 = vmul.f32 %v502, 1.442695
        %v528 = vpow.pop %v527
        %v529 = vmul.f32 %v503, 1.442695
        %v530 = vpow.pop %v529
        %v531 = vmul.f32 %v504, 1.442695
        %v532 = vpow.pop %v531
        %v533 = vmul.f32 %v505, 1.442695
        %v534 = vpow.pop %v533
        %v535 = vmul.f32 %v506, 1.442695
        %v536 = vpow.pop %v535
        %v537 = vmul.f32 %v507, 1.442695
        %v538 = vpow.pop %v537
        %v539 = vmul.f32 %v508, 1.442695
        %v540 = vpow.pop %v539
        %v541 = vadd.f32 %v510, 1.0
        %v542 = vadd.f32 %v512, 1.0
        %v543 = vadd.f32 %v514, 1.0
        %v544 = vadd.f32 %v516, 1.0
        %v545 = vadd.f32 %v518, 1.0
        %v546 = vadd.f32 %v520, 1.0
        %v547 = vadd.f32 %v522, 1.0
        %v548 = vadd.f32 %v524, 1.0
        %v549 = vadd.f32 %v526, 1.0
        %v550 = vadd.f32 %v528, 1.0
        %v551 = vadd.f32 %v530, 1.0
        %v552 = vadd.f32 %v532, 1.0
        %v553 = vadd.f32 %v534, 1.0
        %v554 = vadd.f32 %v536, 1.0
        %v555 = vadd.f32 %v538, 1.0
        %v556 = vadd.f32 %v540, 1.0
        %v557 = vrcp.pop %v541
        %v558 = vmul.f32 1.0, %v557
        %v559 = vrcp.pop %v542
        %v560 = vmul.f32 1.0, %v559
        %v561 = vrcp.pop %v543
        %v562 = vmul.f32 1.0, %v561
        %v563 = vrcp.pop %v544
        %v564 = vmul.f32 1.0, %v563
        %v565 = vrcp.pop %v545
        %v566 = vmul.f32 1.0, %v565
        %v567 = vrcp.pop %v546
        %v568 = vmul.f32 1.0, %v567
        %v569 = vrcp.pop %v547
        %v570 = vmul.f32 1.0, %v569
        %v571 = vrcp.pop %v548
        %v572 = vmul.f32 1.0, %v571
        %v573 = vrcp.pop %v549
        %v574 = vmul.f32 1.0, %v573
        %v575 = vrcp.pop %v550
        %v576 = vmul.f32 1.0, %v575
        %v577 = vrcp.pop %v551
        %v578 = vmul.f32 1.0, %v577
        %v579 = vrcp.pop %v552
        %v580 = vmul.f32 1.0, %v579
        %v581 = vrcp.pop %v553
        %v582 = vmul.f32 1.0, %v581
        %v583 = vrcp.pop %v554
        %v584 = vmul.f32 1.0, %v583
        %v585 = vrcp.pop %v555
        %v586 = vmul.f32 1.0, %v585
        %v587 = vrcp.pop %v556
        %v588 = vmul.f32 1.0, %v587
        %589 = vst [vmem:[%s215] sm:$0xff] %v558
        %590 = vst [vmem:[%s215 + $0x8] sm:$0xff] %v560
        %591 = vst [vmem:[%s215 + $0x10] sm:$0xff] %v562
        %592 = vst [vmem:[%s215 + $0x18] sm:$0xff] %v564
        %593 = vst [vmem:[%s215 + $0x20] sm:$0xff] %v566
        %594 = vst [vmem:[%s215 + $0x28] sm:$0xff] %v568
        %595 = vst [vmem:[%s215 + $0x30] sm:$0xff] %v570
        %596 = vst [vmem:[%s215 + $0x38] sm:$0xff] %v572
        %597 = vst [vmem:[%s215 + $0x40] sm:$0xff] %v574
        %598 = vst [vmem:[%s215 + $0x48] sm:$0xff] %v576
        %599 = vst [vmem:[%s215 + $0x50] sm:$0xff] %v578
        %600 = vst [vmem:[%s215 + $0x58] sm:$0xff] %v580
        %601 = vst [vmem:[%s215 + $0x60] sm:$0xff] %v582
        %602 = vst [vmem:[%s215 + $0x68] sm:$0xff] %v584
        %603 = vst [vmem:[%s215 + $0x70] sm:$0xff] %v586
        %604 = vst [vmem:[%s215 + $0x78] sm:$0xff] %v588
        %s605 = sand.u32 %s96, 1
        %s606 = scalar_lea.sflag [#allocation4], %s605
        %s607 = sand.u32 %s96, 1
        %s608 = smul.addr %s607, 128
        %s609 = scalar_lea.vmem [#allocation7], %s608
        // Predicated region
        $region37: #{_gaemf_forward_jit.3} parent=27 // pred_check
          %p610 = pneg %p106
        $region38: #{_gaemf_forward_jit.3} parent=27 // pred_check_branch
          %612 = sbr.rel (%p610) target = $region40
        $region39: #{_gaemf_forward_jit.3} parent=27 // pred_region
          %s613 = smul.u32 16, %s26
          %s615 = ssub.s32 2048, 2048
          %616 = vsyncadd %s606, %s615
          %s617 = smul.addr %s613, 2
          %s618 = sadd.s32 %s27, %s617
          %s619 = smul.addr %s618, 128
          %s620 = scalar_lea.hbm %s2, %s619
          %s621 = sshll.u32 %s609, 4
          %s622 = int_to_ptr.vmem [resolvable:$true] %s621
          %627 = dma.vmem_to_hbm [thread:$0]  %s622, 2048, %s620, %s606, 128, 256, 8
        $region40: #{_gaemf_forward_jit.3} parent=27 // pred_fallthru
          _
      $region28: #{_gaemf_forward_jit.3} parent=5 // pred_fallthru
        _
      %p628 = scmp.le.s32.totalorder 2, %s17
      // Predicated region
      $region41: #{_gaemf_forward_jit.3} parent=5 // pred_check
        %p629 = pneg %p628
      $region42: #{_gaemf_forward_jit.3} parent=5 // pred_check_branch
        %631 = sbr.rel (%p629) target = $region44
      $region43: #{_gaemf_forward_jit.3} parent=5 // pred_region
        %s632 = ssub.s32 %s17, 2
        // Predicated region
        $region45: #{_gaemf_forward_jit.3} parent=43 // pred_check
          %p633 = pneg %p112
        $region46: #{_gaemf_forward_jit.3} parent=43 // pred_check_branch
          %635 = sbr.rel (%p633) target = $region48
        $region47: #{_gaemf_forward_jit.3} parent=43 // pred_region
          %s636 = sand.u32 %s97, 1
          %s637 = scalar_lea.sflag [#allocation4], %s636
          %s638 = sand.u32 %s97, 1
          %s639 = smul.addr %s638, 128
          %s640 = scalar_lea.vmem [#allocation7], %s639
          %641 = dma.done %s637, 2048
        $region48: #{_gaemf_forward_jit.3} parent=43 // pred_fallthru
          _
      $region44: #{_gaemf_forward_jit.3} parent=5 // pred_fallthru
        _
    $region6: #{_gaemf_forward_jit.3} parent=1 // loop_footer
      %s21 = sadd.s32 1, %s17
    $region7: #{_gaemf_forward_jit.3} parent=1 // loop_footer_branch
      %16 = sbr.rel target = $region3
    $region8: #{_gaemf_forward_jit.3} parent=1 // loop_exit
      _
    %642 = vsyncpa [#allocation3], 1
    %s643 = scalar_lea.sflag [#allocation3], 1
    %644 = vsyncpa %s643, 1
    %645 = vsyncpa [#allocation6], 1
    %s646 = scalar_lea.sflag [#allocation6], 1
    %647 = vsyncpa %s646, 1
    %648 = vsyncpa [#allocation4], 1
    %s649 = scalar_lea.sflag [#allocation4], 1
    %650 = vsyncpa %s649, 1

// kernel: _gaemf_forward_jit.2
$region0: #{_gaemf_forward_jit.2}
  #allocation0 [shape = 'u32[]', space=smem, size = 0x4, offset = 0x4, fixed_abs, tag = 'smem constant byte address 0x4 - core index']
  #allocation1 [shape = 'u32[144,128]{1,0:T(1,128)}', space=vmem, size = 0x12000, scoped, tag = 'internal scratch']
  %s0 = inlined_call_operand.hbm [shape: f32[256,256], index: 0, kind: input, shape index: {}]
  %s1 = inlined_call_operand.hbm [shape: f32[256,32], index: 1, kind: input, shape index: {}]
  %s2 = inlined_call_operand.hbm [shape: f32[32,64], index: 2, kind: input, shape index: {}]
  %s3 = inlined_call_operand.hbm [shape: f32[256,64], index: 3, kind: output, shape index: {}]
  %s4 = sld [smem:[#allocation0]]
  $region57: #{_gaemf_forward_jit.2} parent=0
    _
  %s6 = ssub.s32 1, %s4
  %s7 = scalar_select 0, %s6, %s4
  $region1: #{_gaemf_forward_jit.2} parent=0
    #allocation2 [shape = 'u8[262144]{0}', space=vmem, size = 0x40000, scoped, tag = 'input window, operand 0']
    #allocation3 [shape = 's32[2]{0}', space=sflag, size = 0x8, scoped, tag = 'scoped memory for _gaemf_forward_jit.2']
    #allocation4 [shape = 's32[2]{0}', space=sflag, size = 0x8, scoped, tag = 'scoped memory for _gaemf_forward_jit.2']
    #allocation5 [shape = 'u8[131072]{0}', space=vmem, size = 0x20000, scoped, tag = 'input window, operand 1, single buffered']
    #allocation6 [shape = 's32[1]{0}', space=sflag, size = 0x4, scoped, tag = 'scoped memory for _gaemf_forward_jit.2']
    #allocation7 [shape = 'u8[16384]{0}', space=vmem, size = 0x4000, scoped, tag = 'input window, operand 2, single buffered']
    #allocation8 [shape = 'u8[131072]{0}', space=vmem, size = 0x20000, scoped, tag = 'output window, operand 0']
    %8 = vsyncpa [#allocation3], 0
    %s9 = scalar_lea.sflag [#allocation3], 1
    %10 = vsyncpa %s9, 0
    %11 = vsyncpa [#allocation6], 0
    %12 = vsyncpa [#allocation4], 0
    %s13 = scalar_lea.sflag [#allocation4], 1
    %14 = vsyncpa %s13, 0
    loop: start=0, step=1, limit=4
    $region2: #{_gaemf_forward_jit.2} parent=1 // loop_pre_header
      _
    $region3: #{_gaemf_forward_jit.2} parent=1 // loop_header
      %s16 = sphi 0, %s20
      %p17 = scmp.ge.s32.totalorder %s16, 4
      %s26 = sphi 0, %s28
      %s29 = sphi 0, %s26
      %s30 = sphi 0, %s29
      %s46 = sphi 0, %s30
      %s50 = sphi 0, %s50
      %s52 = sphi 0, %s50
      %s53 = sphi 0, %s52
      %s67 = sphi 0, %s53
      %s71 = sphi 0, %s71
      %s73 = sphi 0, %s71
      %s74 = sphi 0, %s73
      %s88 = sphi 0, %s74
      %s94 = sphi 0, %s96
      %s97 = sphi 0, %s94
      %s98 = sphi 0, %s97
      %s114 = sphi 0, %s98
    $region4: #{_gaemf_forward_jit.2} parent=1 // loop_header_branch
      %19 = sbr.rel (%p17) target = $region8
    $region5: #{_gaemf_forward_jit.2} parent=1 // loop_body
      %s21 = ssub.s32 %s16, 1
      %s22 = ssub.s32 %s16, 2
      %s23 = sadd.s32 %s16, 1
      %s24 = ssub.s32 %s16, %s23
      %p25 = scmp.eq.s32.totalorder %s24, 0
      %s27 = sadd.s32 %s26, 1
      %s28 = scalar_select %p25, %s26, %s27
      %p31 = pneg %p25
      %p32 = scmp.eq.s32.totalorder %s16, 1
      %p33 = por %p31, %p32
      %p34 = scmp.ne.s32.totalorder %s26, %s29
      %p35 = scmp.eq.s32.totalorder %s16, 0
      %p36 = por %p34, %p35
      %p37 = scmp.ne.s32.totalorder %s26, %s29
      %p38 = scmp.eq.s32.totalorder %s21, 1
      %p39 = por %p37, %p38
      %p40 = scmp.ne.s32.totalorder %s29, %s30
      %p41 = scmp.eq.s32.totalorder %s21, 0
      %p42 = por %p40, %p41
      %p43 = scmp.ne.s32.totalorder %s29, %s30
      %p44 = scmp.eq.s32.totalorder %s22, 1
      %p45 = por %p43, %p44
      %p47 = scmp.ne.s32.totalorder %s30, %s46
      %p48 = scmp.eq.s32.totalorder %s22, 0
      %p49 = por %p47, %p48
      %s51 = sadd.s32 %s50, 1
      %p54 = scmp.eq.s32.totalorder %s16, 1
      %p55 = scmp.ne.s32.totalorder %s50, %s52
      %p56 = scmp.eq.s32.totalorder %s16, 0
      %p57 = por %p55, %p56
      %p58 = scmp.ne.s32.totalorder %s50, %s52
      %p59 = scmp.eq.s32.totalorder %s21, 1
      %p60 = por %p58, %p59
      %p61 = scmp.ne.s32.totalorder %s52, %s53
      %p62 = scmp.eq.s32.totalorder %s21, 0
      %p63 = por %p61, %p62
      %p64 = scmp.ne.s32.totalorder %s52, %s53
      %p65 = scmp.eq.s32.totalorder %s22, 1
      %p66 = por %p64, %p65
      %p68 = scmp.ne.s32.totalorder %s53, %s67
      %p69 = scmp.eq.s32.totalorder %s22, 0
      %p70 = por %p68, %p69
      %s72 = sadd.s32 %s71, 1
      %p75 = scmp.eq.s32.totalorder %s16, 1
      %p76 = scmp.ne.s32.totalorder %s71, %s73
      %p77 = scmp.eq.s32.totalorder %s16, 0
      %p78 = por %p76, %p77
      %p79 = scmp.ne.s32.totalorder %s71, %s73
      %p80 = scmp.eq.s32.totalorder %s21, 1
      %p81 = por %p79, %p80
      %p82 = scmp.ne.s32.totalorder %s73, %s74
      %p83 = scmp.eq.s32.totalorder %s21, 0
      %p84 = por %p82, %p83
      %p85 = scmp.ne.s32.totalorder %s73, %s74
      %p86 = scmp.eq.s32.totalorder %s22, 1
      %p87 = por %p85, %p86
      %p89 = scmp.ne.s32.totalorder %s74, %s88
      %p90 = scmp.eq.s32.totalorder %s22, 0
      %p91 = por %p89, %p90
      %s92 = ssub.s32 %s16, %s23
      %p93 = scmp.eq.s32.totalorder %s92, 0
      %s95 = sadd.s32 %s94, 1
      %s96 = scalar_select %p93, %s94, %s95
      %p99 = pneg %p93
      %p100 = scmp.eq.s32.totalorder %s16, 1
      %p101 = por %p99, %p100
      %p102 = scmp.ne.s32.totalorder %s94, %s97
      %p103 = scmp.eq.s32.totalorder %s16, 0
      %p104 = por %p102, %p103
      %p105 = scmp.ne.s32.totalorder %s94, %s97
      %p106 = scmp.eq.s32.totalorder %s21, 1
      %p107 = por %p105, %p106
      %p108 = scmp.ne.s32.totalorder %s97, %s98
      %p109 = scmp.eq.s32.totalorder %s21, 0
      %p110 = por %p108, %p109
      %p111 = scmp.ne.s32.totalorder %s97, %s98
      %p112 = scmp.eq.s32.totalorder %s22, 1
      %p113 = por %p111, %p112
      %p115 = scmp.ne.s32.totalorder %s98, %s114
      %p116 = scmp.eq.s32.totalorder %s22, 0
      %p117 = por %p115, %p116
      %p118 = scmp.le.s32.totalorder 1, %s16
      %p119 = scmp.lt.s32.totalorder %s16, 3
      %p120 = pnand %p118, %p119
      %p121 = pneg %p120
      // Predicated region
      $region9: #{_gaemf_forward_jit.2} parent=5 // pred_check
        _
      $region10: #{_gaemf_forward_jit.2} parent=5 // pred_check_branch
        %123 = sbr.rel (%p120) target = $region12
      $region11: #{_gaemf_forward_jit.2} parent=5 // pred_region
        %s124 = ssub.s32 %s16, 1
        // Predicated region
        $region13: #{_gaemf_forward_jit.2} parent=11 // pred_check
          %p125 = pneg %p63
        $region14: #{_gaemf_forward_jit.2} parent=11 // pred_check_branch
          %127 = sbr.rel (%p125) target = $region16
        $region15: #{_gaemf_forward_jit.2} parent=11 // pred_region
          %s129 = ssub.s32 4096, 4096
          %130 = vsyncadd [#allocation6], %s129
          %s131 = sshll.u32 [#allocation5], 4
          %s132 = int_to_ptr.vmem [resolvable:$true] %s131
          %137 = dma.hbm_to_vmem [thread:$0]  %s1, 4096, %s132, [#allocation6], 128, 128, 8
        $region16: #{_gaemf_forward_jit.2} parent=11 // pred_fallthru
          _
        // Predicated region
        $region17: #{_gaemf_forward_jit.2} parent=11 // pred_check
          %p138 = pneg %p84
        $region18: #{_gaemf_forward_jit.2} parent=11 // pred_check_branch
          %140 = sbr.rel (%p138) target = $region20
        $region19: #{_gaemf_forward_jit.2} parent=11 // pred_region
          %s142 = ssub.s32 512, 512
          %143 = vsyncadd [#allocation6], %s142
          %s144 = sshll.u32 [#allocation7], 4
          %s145 = int_to_ptr.vmem [resolvable:$true] %s144
          %150 = dma.hbm_to_vmem [thread:$0]  %s2, 512, %s145, [#allocation6], 128, 128, 8
        $region20: #{_gaemf_forward_jit.2} parent=11 // pred_fallthru
          _
      $region12: #{_gaemf_forward_jit.2} parent=5 // pred_fallthru
        _
      %p151 = scmp.lt.s32.totalorder %s16, 2
      // Predicated region
      $region21: #{_gaemf_forward_jit.2} parent=5 // pred_check
        %p152 = pneg %p151
      $region22: #{_gaemf_forward_jit.2} parent=5 // pred_check_branch
        %154 = sbr.rel (%p152) target = $region24
      $region23: #{_gaemf_forward_jit.2} parent=5 // pred_region
        // Predicated region
        $region25: #{_gaemf_forward_jit.2} parent=23 // pred_check
          %p155 = pneg %p36
        $region26: #{_gaemf_forward_jit.2} parent=23 // pred_check_branch
          %157 = sbr.rel (%p155) target = $region28
        $region27: #{_gaemf_forward_jit.2} parent=23 // pred_region
          %s158 = sand.u32 %s26, 1
          %s159 = scalar_lea.sflag [#allocation3], %s158
          %s160 = sand.u32 %s26, 1
          %s161 = smul.addr %s160, 256
          %s162 = scalar_lea.vmem [#allocation2], %s161
          %s163 = smul.u32 16, %s16
          %s165 = ssub.s32 4096, 4096
          %166 = vsyncadd %s159, %s165
          %s167 = smul.addr %s163, 2
          %s168 = smul.addr %s167, 128
          %s169 = scalar_lea.hbm %s0, %s168
          %s170 = sshll.u32 %s162, 4
          %s171 = int_to_ptr.vmem [resolvable:$true] %s170
          %176 = dma.hbm_to_vmem [thread:$0]  %s169, 4096, %s171, %s159, 256, 256, 16
        $region28: #{_gaemf_forward_jit.2} parent=23 // pred_fallthru
          _
      $region24: #{_gaemf_forward_jit.2} parent=5 // pred_fallthru
        _
      %p177 = scmp.le.s32.totalorder 1, %s16
      %p178 = scmp.lt.s32.totalorder %s16, 3
      %p179 = pnand %p177, %p178
      %p180 = pneg %p179
      // Predicated region
      $region29: #{_gaemf_forward_jit.2} parent=5 // pred_check
        _
      $region30: #{_gaemf_forward_jit.2} parent=5 // pred_check_branch
        %182 = sbr.rel (%p179) target = $region32
      $region31: #{_gaemf_forward_jit.2} parent=5 // pred_region
        %s183 = ssub.s32 %s16, 1
        %s184 = sand.u32 %s29, 1
        %s185 = scalar_lea.sflag [#allocation3], %s184
        %s186 = sand.u32 %s29, 1
        %s187 = smul.addr %s186, 256
        %s188 = scalar_lea.vmem [#allocation2], %s187
        // Predicated region
        $region33: #{_gaemf_forward_jit.2} parent=31 // pred_check
          %p189 = pneg %p42
        $region34: #{_gaemf_forward_jit.2} parent=31 // pred_check_branch
          %191 = sbr.rel (%p189) target = $region36
        $region35: #{_gaemf_forward_jit.2} parent=31 // pred_region
          %192 = dma.done %s185, 4096
        $region36: #{_gaemf_forward_jit.2} parent=31 // pred_fallthru
          _
        // Predicated region
        $region37: #{_gaemf_forward_jit.2} parent=31 // pred_check
          %p193 = pneg %p63
        $region38: #{_gaemf_forward_jit.2} parent=31 // pred_check_branch
          %195 = sbr.rel (%p193) target = $region40
        $region39: #{_gaemf_forward_jit.2} parent=31 // pred_region
          %196 = dma.done [#allocation6], 4096
        $region40: #{_gaemf_forward_jit.2} parent=31 // pred_fallthru
          _
        // Predicated region
        $region41: #{_gaemf_forward_jit.2} parent=31 // pred_check
          %p197 = pneg %p84
        $region42: #{_gaemf_forward_jit.2} parent=31 // pred_check_branch
          %199 = sbr.rel (%p197) target = $region44
        $region43: #{_gaemf_forward_jit.2} parent=31 // pred_region
          %200 = dma.done [#allocation6], 512
        $region44: #{_gaemf_forward_jit.2} parent=31 // pred_fallthru
          _
        %s201 = sand.u32 %s29, 1
        %s202 = scalar_lea.sflag [#allocation3], %s201
        %s203 = sand.u32 %s29, 1
        %s204 = smul.addr %s203, 256
        %s205 = scalar_lea.vmem [#allocation2], %s204
        %p206 = pneg %p42
        %p207 = pneg %p39
        %p208 = pneg %p63
        %p209 = pneg %p60
        %p210 = pneg %p84
        %p211 = pneg %p81
        %p212 = pneg %p110
        %p213 = pneg %p107
        %s214 = sand.u32 %s97, 1
        %s215 = scalar_lea.sflag [#allocation4], %s214
        %s216 = sand.u32 %s97, 1
        %s217 = smul.addr %s216, 128
        %s218 = scalar_lea.vmem [#allocation8], %s217
        %s219 = smul.u32 16, %s21
        %s220 = smul.u32 16, %s21
        %v221 = vld [vmem:[%s188] sm:$0xff]
        %v222 = vld [vmem:[%s188 + $0x8] sm:$0xff]
        %v223 = vld [vmem:[%s188 + $0x10] sm:$0xff]
        %v224 = vld [vmem:[%s188 + $0x18] sm:$0xff]
        %v225 = vld [vmem:[%s188 + $0x20] sm:$0xff]
        %v226 = vld [vmem:[%s188 + $0x28] sm:$0xff]
        %v227 = vld [vmem:[%s188 + $0x30] sm:$0xff]
        %v228 = vld [vmem:[%s188 + $0x38] sm:$0xff]
        %v229 = vld [vmem:[%s188 + $0x40] sm:$0xff]
        %v230 = vld [vmem:[%s188 + $0x48] sm:$0xff]
        %v231 = vld [vmem:[%s188 + $0x50] sm:$0xff]
        %v232 = vld [vmem:[%s188 + $0x58] sm:$0xff]
        %v233 = vld [vmem:[%s188 + $0x60] sm:$0xff]
        %v234 = vld [vmem:[%s188 + $0x68] sm:$0xff]
        %v235 = vld [vmem:[%s188 + $0x70] sm:$0xff]
        %v236 = vld [vmem:[%s188 + $0x78] sm:$0xff]
        %v237 = vld [vmem:[%s188 + $0x80] sm:$0xff]
        %v238 = vld [vmem:[%s188 + $0x88] sm:$0xff]
        %v239 = vld [vmem:[%s188 + $0x90] sm:$0xff]
        %v240 = vld [vmem:[%s188 + $0x98] sm:$0xff]
        %v241 = vld [vmem:[%s188 + $0xa0] sm:$0xff]
        %v242 = vld [vmem:[%s188 + $0xa8] sm:$0xff]
        %v243 = vld [vmem:[%s188 + $0xb0] sm:$0xff]
        %v244 = vld [vmem:[%s188 + $0xb8] sm:$0xff]
        %v245 = vld [vmem:[%s188 + $0xc0] sm:$0xff]
        %v246 = vld [vmem:[%s188 + $0xc8] sm:$0xff]
        %v247 = vld [vmem:[%s188 + $0xd0] sm:$0xff]
        %v248 = vld [vmem:[%s188 + $0xd8] sm:$0xff]
        %v249 = vld [vmem:[%s188 + $0xe0] sm:$0xff]
        %v250 = vld [vmem:[%s188 + $0xe8] sm:$0xff]
        %v251 = vld [vmem:[%s188 + $0xf0] sm:$0xff]
        %v252 = vld [vmem:[%s188 + $0xf8] sm:$0xff]
        %v253 = vld [vmem:[#allocation5] sm:$0xff]
        %v254 = vld [vmem:[#allocation5 + $0x8] sm:$0xff]
        %v255 = vld [vmem:[#allocation5 + $0x10] sm:$0xff]
        %v256 = vld [vmem:[#allocation5 + $0x18] sm:$0xff]
        %v257 = vld [vmem:[#allocation5 + $0x20] sm:$0xff]
        %v258 = vld [vmem:[#allocation5 + $0x28] sm:$0xff]
        %v259 = vld [vmem:[#allocation5 + $0x30] sm:$0xff]
        %v260 = vld [vmem:[#allocation5 + $0x38] sm:$0xff]
        %v261 = vld [vmem:[#allocation5 + $0x40] sm:$0xff]
        %v262 = vld [vmem:[#allocation5 + $0x48] sm:$0xff]
        %v263 = vld [vmem:[#allocation5 + $0x50] sm:$0xff]
        %v264 = vld [vmem:[#allocation5 + $0x58] sm:$0xff]
        %v265 = vld [vmem:[#allocation5 + $0x60] sm:$0xff]
        %v266 = vld [vmem:[#allocation5 + $0x68] sm:$0xff]
        %v267 = vld [vmem:[#allocation5 + $0x70] sm:$0xff]
        %v268 = vld [vmem:[#allocation5 + $0x78] sm:$0xff]
        %v269 = vld [vmem:[#allocation5 + $0x80] sm:$0xff]
        %v270 = vld [vmem:[#allocation5 + $0x88] sm:$0xff]
        %v271 = vld [vmem:[#allocation5 + $0x90] sm:$0xff]
        %v272 = vld [vmem:[#allocation5 + $0x98] sm:$0xff]
        %v273 = vld [vmem:[#allocation5 + $0xa0] sm:$0xff]
        %v274 = vld [vmem:[#allocation5 + $0xa8] sm:$0xff]
        %v275 = vld [vmem:[#allocation5 + $0xb0] sm:$0xff]
        %v276 = vld [vmem:[#allocation5 + $0xb8] sm:$0xff]
        %v277 = vld [vmem:[#allocation5 + $0xc0] sm:$0xff]
        %v278 = vld [vmem:[#allocation5 + $0xc8] sm:$0xff]
        %v279 = vld [vmem:[#allocation5 + $0xd0] sm:$0xff]
        %v280 = vld [vmem:[#allocation5 + $0xd8] sm:$0xff]
        %v281 = vld [vmem:[#allocation5 + $0xe0] sm:$0xff]
        %v282 = vld [vmem:[#allocation5 + $0xe8] sm:$0xff]
        %v283 = vld [vmem:[#allocation5 + $0xf0] sm:$0xff]
        %v284 = vld [vmem:[#allocation5 + $0xf8] sm:$0xff]
        %285 = vmatprep.subr.mxu0 0.0
        %286 = vmatpush1.msra.mxu0 %v253
        %287 = vmatprep.subr.mxu0 0.0
        %288 = vmatpush1.msra.mxu0 %v254
        %289 = vmatprep.subr.mxu0 0.0
        %290 = vmatpush1.msra.mxu0 %v255
        %291 = vmatprep.subr.mxu0 0.0
        %292 = vmatpush1.msra.mxu0 %v256
        %293 = vmatprep.subr.mxu0 0.0
        %294 = vmatpush1.msra.mxu0 %v257
        %295 = vmatprep.subr.mxu0 0.0
        %296 = vmatpush1.msra.mxu0 %v258
        %297 = vmatprep.subr.mxu0 0.0
        %298 = vmatpush1.msra.mxu0 %v259
        %299 = vmatprep.subr.mxu0 0.0
        %300 = vmatpush1.msra.mxu0 %v260
        %301 = vmatprep.subr.mxu0 0.0
        %302 = vmatpush1.msra.mxu0 %v261
        %303 = vmatprep.subr.mxu0 0.0
        %304 = vmatpush1.msra.mxu0 %v262
        %305 = vmatprep.subr.mxu0 0.0
        %306 = vmatpush1.msra.mxu0 %v263
        %307 = vmatprep.subr.mxu0 0.0
        %308 = vmatpush1.msra.mxu0 %v264
        %309 = vmatprep.subr.mxu0 0.0
        %310 = vmatpush1.msra.mxu0 %v265
        %311 = vmatprep.subr.mxu0 0.0
        %312 = vmatpush1.msra.mxu0 %v266
        %313 = vmatprep.subr.mxu0 0.0
        %314 = vmatpush1.msra.mxu0 %v267
        %315 = vmatprep.subr.mxu0 0.0
        %316 = vmatpush1.msra.mxu0 %v268
        %317 = vmatprep.subr.mxu0 0.0
        %318 = vmatpush1.msra.mxu0 %v269
        %319 = vmatprep.subr.mxu0 0.0
        %320 = vmatpush1.msra.mxu0 %v270
        %321 = vmatprep.subr.mxu0 0.0
        %322 = vmatpush1.msra.mxu0 %v271
        %323 = vmatprep.subr.mxu0 0.0
        %324 = vmatpush1.msra.mxu0 %v272
        %325 = vmatprep.subr.mxu0 0.0
        %326 = vmatpush1.msra.mxu0 %v273
        %327 = vmatprep.subr.mxu0 0.0
        %328 = vmatpush1.msra.mxu0 %v274
        %329 = vmatprep.subr.mxu0 0.0
        %330 = vmatpush1.msra.mxu0 %v275
        %331 = vmatprep.subr.mxu0 0.0
        %332 = vmatpush1.msra.mxu0 %v276
        %333 = vmatprep.subr.mxu0 0.0
        %334 = vmatpush1.msra.mxu0 %v277
        %335 = vmatprep.subr.mxu0 0.0
        %336 = vmatpush1.msra.mxu0 %v278
        %337 = vmatprep.subr.mxu0 0.0
        %338 = vmatpush1.msra.mxu0 %v279
        %339 = vmatprep.subr.mxu0 0.0
        %340 = vmatpush1.msra.mxu0 %v280
        %341 = vmatprep.subr.mxu0 0.0
        %342 = vmatpush1.msra.mxu0 %v281
        %343 = vmatprep.subr.mxu0 0.0
        %344 = vmatpush1.msra.mxu0 %v282
        %345 = vmatprep.subr.mxu0 0.0
        %346 = vmatpush1.msra.mxu0 %v283
        %347 = vmatprep.subr.mxu0 0.0
        %348 = vmatpush1.msra.mxu0 %v284
        %349 = vmatprep.mubr.f32.mxu0 %v222
        %350 = vmatmul.mubr.f32.gmra.mrb[0].mxu0 %v221
        %v351 = vpop.f32.mrb[0].mxu0
        %v352 = vadd.f32 0.0, %v351
        %v353 = vpop.f32.mrb[0].mxu0
        %354 = vmatprep.mubr.f32.mxu0 %v224
        %355 = vmatmul.mubr.f32.gmra.mrb[0].mxu0 %v223
        %v356 = vpop.f32.mrb[0].mxu0
        %v357 = vadd.f32 0.0, %v356
        %v358 = vpop.f32.mrb[0].mxu0
        %359 = vmatprep.mubr.f32.mxu0 %v226
        %360 = vmatmul.mubr.f32.gmra.mrb[0].mxu0 %v225
        %v361 = vpop.f32.mrb[0].mxu0
        %v362 = vadd.f32 0.0, %v361
        %v363 = vpop.f32.mrb[0].mxu0
        %364 = vmatprep.mubr.f32.mxu0 %v228
        %365 = vmatmul.mubr.f32.gmra.mrb[0].mxu0 %v227
        %v366 = vpop.f32.mrb[0].mxu0
        %v367 = vadd.f32 0.0, %v366
        %v368 = vpop.f32.mrb[0].mxu0
        %369 = vmatprep.mubr.f32.mxu0 %v230
        %370 = vmatmul.mubr.f32.gmra.mrb[0].mxu0 %v229
        %v371 = vpop.f32.mrb[0].mxu0
        %v372 = vadd.f32 0.0, %v371
        %v373 = vpop.f32.mrb[0].mxu0
        %374 = vmatprep.mubr.f32.mxu0 %v232
        %375 = vmatmul.mubr.f32.gmra.mrb[0].mxu0 %v231
        %v376 = vpop.f32.mrb[0].mxu0
        %v377 = vadd.f32 0.0, %v376
        %v378 = vpop.f32.mrb[0].mxu0
        %379 = vmatprep.mubr.f32.mxu0 %v234
        %380 = vmatmul.mubr.f32.gmra.mrb[0].mxu0 %v233
        %v381 = vpop.f32.mrb[0].mxu0
        %v382 = vadd.f32 0.0, %v381
        %v383 = vpop.f32.mrb[0].mxu0
        %384 = vmatprep.mubr.f32.mxu0 %v236
        %385 = vmatmul.mubr.f32.gmra.mrb[0].mxu0 %v235
        %v386 = vpop.f32.mrb[0].mxu0
        %v387 = vadd.f32 0.0, %v386
        %v388 = vpop.f32.mrb[0].mxu0
        %389 = vmatprep.mubr.f32.mxu0 %v238
        %390 = vmatmul.mubr.f32.gmra.mrb[0].mxu0 %v237
        %v391 = vpop.f32.mrb[0].mxu0
        %v392 = vadd.f32 0.0, %v391
        %v393 = vpop.f32.mrb[0].mxu0
        %394 = vmatprep.mubr.f32.mxu0 %v240
        %395 = vmatmul.mubr.f32.gmra.mrb[0].mxu0 %v239
        %v396 = vpop.f32.mrb[0].mxu0
        %v397 = vadd.f32 0.0, %v396
        %v398 = vpop.f32.mrb[0].mxu0
        %399 = vmatprep.mubr.f32.mxu0 %v242
        %400 = vmatmul.mubr.f32.gmra.mrb[0].mxu0 %v241
        %v401 = vpop.f32.mrb[0].mxu0
        %v402 = vadd.f32 0.0, %v401
        %v403 = vpop.f32.mrb[0].mxu0
        %404 = vmatprep.mubr.f32.mxu0 %v244
        %405 = vmatmul.mubr.f32.gmra.mrb[0].mxu0 %v243
        %v406 = vpop.f32.mrb[0].mxu0
        %v407 = vadd.f32 0.0, %v406
        %v408 = vpop.f32.mrb[0].mxu0
        %409 = vmatprep.mubr.f32.mxu0 %v246
        %410 = vmatmul.mubr.f32.gmra.mrb[0].mxu0 %v245
        %v411 = vpop.f32.mrb[0].mxu0
        %v412 = vadd.f32 0.0, %v411
        %v413 = vpop.f32.mrb[0].mxu0
        %414 = vmatprep.mubr.f32.mxu0 %v248
        %415 = vmatmul.mubr.f32.gmra.mrb[0].mxu0 %v247
        %v416 = vpop.f32.mrb[0].mxu0
        %v417 = vadd.f32 0.0, %v416
        %v418 = vpop.f32.mrb[0].mxu0
        %419 = vmatprep.mubr.f32.mxu0 %v250
        %420 = vmatmul.mubr.f32.gmra.mrb[0].mxu0 %v249
        %v421 = vpop.f32.mrb[0].mxu0
        %v422 = vadd.f32 0.0, %v421
        %v423 = vpop.f32.mrb[0].mxu0
        %424 = vmatprep.mubr.f32.mxu0 %v252
        %425 = vmatmul.mubr.f32.gmra.mrb[0].mxu0 %v251
        %v426 = vpop.f32.mrb[0].mxu0
        %v427 = vadd.f32 0.0, %v426
        %v428 = vpop.f32.mrb[0].mxu0
        %429 = vdwg.mxu0
        %v430 = vld [vmem:[#allocation7] sm:$0xff]
        %v431 = vld [vmem:[#allocation7 + $0x8] sm:$0xff]
        %v432 = vld [vmem:[#allocation7 + $0x10] sm:$0xff]
        %v433 = vld [vmem:[#allocation7 + $0x18] sm:$0xff]
        %vm434 = vcmask 261120
        %v436 = vsel %vm434, %v352, 0
        %v439 = vsel %vm434, %v357, 0
        %v442 = vsel %vm434, %v362, 0
        %v445 = vsel %vm434, %v367, 0
        %v448 = vsel %vm434, %v372, 0
        %v451 = vsel %vm434, %v377, 0
        %v454 = vsel %vm434, %v382, 0
        %v457 = vsel %vm434, %v387, 0
        %v460 = vsel %vm434, %v392, 0
        %v463 = vsel %vm434, %v397, 0
        %v466 = vsel %vm434, %v402, 0
        %v469 = vsel %vm434, %v407, 0
        %v472 = vsel %vm434, %v412, 0
        %v475 = vsel %vm434, %v417, 0
        %v478 = vsel %vm434, %v422, 0
        %v481 = vsel %vm434, %v427, 0
        %483 = vmatprep.subr.mxu0 0.0
        %484 = vmatpush1.msra.mxu0 %v430
        %485 = vmatprep.subr.mxu0 0.0
        %486 = vmatpush1.msra.mxu0 %v431
        %487 = vmatprep.subr.mxu0 0.0
        %488 = vmatpush1.msra.mxu0 %v432
        %489 = vmatprep.subr.mxu0 0.0
        %490 = vmatpush1.msra.mxu0 %v433
        %491 = vmatprep.subr.mxu0 0.0
        %492 = vmatpush1.msra.mxu0 0.0
        %493 = vmatprep.subr.mxu0 0.0
        %494 = vmatpush1.msra.mxu0 0.0
        %495 = vmatprep.subr.mxu0 0.0
        %496 = vmatpush1.msra.mxu0 0.0
        %497 = vmatprep.subr.mxu0 0.0
        %498 = vmatpush1.msra.mxu0 0.0
        %499 = vmatprep.subr.mxu0 0.0
        %500 = vmatpush1.msra.mxu0 0.0
        %501 = vmatprep.subr.mxu0 0.0
        %502 = vmatpush1.msra.mxu0 0.0
        %503 = vmatprep.subr.mxu0 0.0
        %504 = vmatpush1.msra.mxu0 0.0
        %505 = vmatprep.subr.mxu0 0.0
        %506 = vmatpush1.msra.mxu0 0.0
        %507 = vmatprep.subr.mxu0 0.0
        %508 = vmatpush1.msra.mxu0 0.0
        %509 = vmatprep.subr.mxu0 0.0
        %510 = vmatpush1.msra.mxu0 0.0
        %511 = vmatprep.subr.mxu0 0.0
        %512 = vmatpush1.msra.mxu0 0.0
        %513 = vmatprep.subr.mxu0 0.0
        %514 = vmatpush1.msra.mxu0 0.0
        %515 = vmatprep.subr.mxu0 0.0
        %516 = vmatpush1.msra.mxu0 0.0
        %517 = vmatprep.subr.mxu0 0.0
        %518 = vmatpush1.msra.mxu0 0.0
        %519 = vmatprep.subr.mxu0 0.0
        %520 = vmatpush1.msra.mxu0 0.0
        %521 = vmatprep.subr.mxu0 0.0
        %522 = vmatpush1.msra.mxu0 0.0
        %523 = vmatprep.subr.mxu0 0.0
        %524 = vmatpush1.msra.mxu0 0.0
        %525 = vmatprep.subr.mxu0 0.0
        %526 = vmatpush1.msra.mxu0 0.0
        %527 = vmatprep.subr.mxu0 0.0
        %528 = vmatpush1.msra.mxu0 0.0
        %529 = vmatprep.subr.mxu0 0.0
        %530 = vmatpush1.msra.mxu0 0.0
        %531 = vmatprep.subr.mxu0 0.0
        %532 = vmatpush1.msra.mxu0 0.0
        %533 = vmatprep.subr.mxu0 0.0
        %534 = vmatpush1.msra.mxu0 0.0
        %535 = vmatprep.subr.mxu0 0.0
        %536 = vmatpush1.msra.mxu0 0.0
        %537 = vmatprep.subr.mxu0 0.0
        %538 = vmatpush1.msra.mxu0 0.0
        %539 = vmatprep.subr.mxu0 0.0
        %540 = vmatpush1.msra.mxu0 0.0
        %541 = vmatprep.subr.mxu0 0.0
        %542 = vmatpush1.msra.mxu0 0.0
        %543 = vmatprep.subr.mxu0 0.0
        %544 = vmatpush1.msra.mxu0 0.0
        %545 = vmatprep.subr.mxu0 0.0
        %546 = vmatpush1.msra.mxu0 0.0
        %547 = vmatprep.mubr.f32.mxu0 0.0
        %548 = vmatmul.mubr.f32.gmra.mrb[0].mxu0 %v436
        %v549 = vpop.f32.mrb[0].mxu0
        %v550 = vadd.f32 0.0, %v549
        %v551 = vpop.f32.mrb[0].mxu0
        %552 = vmatprep.mubr.f32.mxu0 0.0
        %553 = vmatmul.mubr.f32.gmra.mrb[0].mxu0 %v439
        %v554 = vpop.f32.mrb[0].mxu0
        %v555 = vadd.f32 0.0, %v554
        %v556 = vpop.f32.mrb[0].mxu0
        %557 = vmatprep.mubr.f32.mxu0 0.0
        %558 = vmatmul.mubr.f32.gmra.mrb[0].mxu0 %v442
        %v559 = vpop.f32.mrb[0].mxu0
        %v560 = vadd.f32 0.0, %v559
        %v561 = vpop.f32.mrb[0].mxu0
        %562 = vmatprep.mubr.f32.mxu0 0.0
        %563 = vmatmul.mubr.f32.gmra.mrb[0].mxu0 %v445
        %v564 = vpop.f32.mrb[0].mxu0
        %v565 = vadd.f32 0.0, %v564
        %v566 = vpop.f32.mrb[0].mxu0
        %567 = vmatprep.mubr.f32.mxu0 0.0
        %568 = vmatmul.mubr.f32.gmra.mrb[0].mxu0 %v448
        %v569 = vpop.f32.mrb[0].mxu0
        %v570 = vadd.f32 0.0, %v569
        %v571 = vpop.f32.mrb[0].mxu0
        %572 = vmatprep.mubr.f32.mxu0 0.0
        %573 = vmatmul.mubr.f32.gmra.mrb[0].mxu0 %v451
        %v574 = vpop.f32.mrb[0].mxu0
        %v575 = vadd.f32 0.0, %v574
        %v576 = vpop.f32.mrb[0].mxu0
        %577 = vmatprep.mubr.f32.mxu0 0.0
        %578 = vmatmul.mubr.f32.gmra.mrb[0].mxu0 %v454
        %v579 = vpop.f32.mrb[0].mxu0
        %v580 = vadd.f32 0.0, %v579
        %v581 = vpop.f32.mrb[0].mxu0
        %582 = vmatprep.mubr.f32.mxu0 0.0
        %583 = vmatmul.mubr.f32.gmra.mrb[0].mxu0 %v457
        %v584 = vpop.f32.mrb[0].mxu0
        %v585 = vadd.f32 0.0, %v584
        %v586 = vpop.f32.mrb[0].mxu0
        %587 = vmatprep.mubr.f32.mxu0 0.0
        %588 = vmatmul.mubr.f32.gmra.mrb[0].mxu0 %v460
        %v589 = vpop.f32.mrb[0].mxu0
        %v590 = vadd.f32 0.0, %v589
        %v591 = vpop.f32.mrb[0].mxu0
        %592 = vmatprep.mubr.f32.mxu0 0.0
        %593 = vmatmul.mubr.f32.gmra.mrb[0].mxu0 %v463
        %v594 = vpop.f32.mrb[0].mxu0
        %v595 = vadd.f32 0.0, %v594
        %v596 = vpop.f32.mrb[0].mxu0
        %597 = vmatprep.mubr.f32.mxu0 0.0
        %598 = vmatmul.mubr.f32.gmra.mrb[0].mxu0 %v466
        %v599 = vpop.f32.mrb[0].mxu0
        %v600 = vadd.f32 0.0, %v599
        %v601 = vpop.f32.mrb[0].mxu0
        %602 = vmatprep.mubr.f32.mxu0 0.0
        %603 = vmatmul.mubr.f32.gmra.mrb[0].mxu0 %v469
        %v604 = vpop.f32.mrb[0].mxu0
        %v605 = vadd.f32 0.0, %v604
        %v606 = vpop.f32.mrb[0].mxu0
        %607 = vmatprep.mubr.f32.mxu0 0.0
        %608 = vmatmul.mubr.f32.gmra.mrb[0].mxu0 %v472
        %v609 = vpop.f32.mrb[0].mxu0
        %v610 = vadd.f32 0.0, %v609
        %v611 = vpop.f32.mrb[0].mxu0
        %612 = vmatprep.mubr.f32.mxu0 0.0
        %613 = vmatmul.mubr.f32.gmra.mrb[0].mxu0 %v475
        %v614 = vpop.f32.mrb[0].mxu0
        %v615 = vadd.f32 0.0, %v614
        %v616 = vpop.f32.mrb[0].mxu0
        %617 = vmatprep.mubr.f32.mxu0 0.0
        %618 = vmatmul.mubr.f32.gmra.mrb[0].mxu0 %v478
        %v619 = vpop.f32.mrb[0].mxu0
        %v620 = vadd.f32 0.0, %v619
        %v621 = vpop.f32.mrb[0].mxu0
        %622 = vmatprep.mubr.f32.mxu0 0.0
        %623 = vmatmul.mubr.f32.gmra.mrb[0].mxu0 %v481
        %v624 = vpop.f32.mrb[0].mxu0
        %v625 = vadd.f32 0.0, %v624
        %v626 = vpop.f32.mrb[0].mxu0
        %627 = vdwg.mxu0
        %v628 = vmax.f32 %v550, 0.0
        %v629 = vmax.f32 %v555, 0.0
        %v630 = vmax.f32 %v560, 0.0
        %v631 = vmax.f32 %v565, 0.0
        %v632 = vmax.f32 %v570, 0.0
        %v633 = vmax.f32 %v575, 0.0
        %v634 = vmax.f32 %v580, 0.0
        %v635 = vmax.f32 %v585, 0.0
        %v636 = vmax.f32 %v590, 0.0
        %v637 = vmax.f32 %v595, 0.0
        %v638 = vmax.f32 %v600, 0.0
        %v639 = vmax.f32 %v605, 0.0
        %v640 = vmax.f32 %v610, 0.0
        %v641 = vmax.f32 %v615, 0.0
        %v642 = vmax.f32 %v620, 0.0
        %v643 = vmax.f32 %v625, 0.0
        %vm644 = vcmask 523264
        %645 = vst.msk [vmem:[%s218] sm:$0xff] %vm644, %v628
        %646 = vst.msk [vmem:[%s218 + $0x8] sm:$0xff] %vm644, %v629
        %647 = vst.msk [vmem:[%s218 + $0x10] sm:$0xff] %vm644, %v630
        %648 = vst.msk [vmem:[%s218 + $0x18] sm:$0xff] %vm644, %v631
        %649 = vst.msk [vmem:[%s218 + $0x20] sm:$0xff] %vm644, %v632
        %650 = vst.msk [vmem:[%s218 + $0x28] sm:$0xff] %vm644, %v633
        %651 = vst.msk [vmem:[%s218 + $0x30] sm:$0xff] %vm644, %v634
        %652 = vst.msk [vmem:[%s218 + $0x38] sm:$0xff] %vm644, %v635
        %653 = vst.msk [vmem:[%s218 + $0x40] sm:$0xff] %vm644, %v636
        %654 = vst.msk [vmem:[%s218 + $0x48] sm:$0xff] %vm644, %v637
        %655 = vst.msk [vmem:[%s218 + $0x50] sm:$0xff] %vm644, %v638
        %656 = vst.msk [vmem:[%s218 + $0x58] sm:$0xff] %vm644, %v639
        %657 = vst.msk [vmem:[%s218 + $0x60] sm:$0xff] %vm644, %v640
        %658 = vst.msk [vmem:[%s218 + $0x68] sm:$0xff] %vm644, %v641
        %659 = vst.msk [vmem:[%s218 + $0x70] sm:$0xff] %vm644, %v642
        %660 = vst.msk [vmem:[%s218 + $0x78] sm:$0xff] %vm644, %v643
        %s661 = sand.u32 %s97, 1
        %s662 = scalar_lea.sflag [#allocation4], %s661
        %s663 = sand.u32 %s97, 1
        %s664 = smul.addr %s663, 128
        %s665 = scalar_lea.vmem [#allocation8], %s664
        // Predicated region
        $region45: #{_gaemf_forward_jit.2} parent=31 // pred_check
          %p666 = pneg %p107
        $region46: #{_gaemf_forward_jit.2} parent=31 // pred_check_branch
          %668 = sbr.rel (%p666) target = $region48
        $region47: #{_gaemf_forward_jit.2} parent=31 // pred_region
          %s669 = smul.u32 16, %s21
          %s671 = ssub.s32 2048, 2048
          %672 = vsyncadd %s662, %s671
          %s673 = smul.addr %s669, 128
          %s674 = scalar_lea.hbm %s3, %s673
          %s675 = sshll.u32 %s665, 4
          %s676 = int_to_ptr.vmem [resolvable:$true] %s675
          %681 = dma.vmem_to_hbm [thread:$0]  %s676, 2048, %s674, %s662, 128, 128, 8
        $region48: #{_gaemf_forward_jit.2} parent=31 // pred_fallthru
          _
      $region32: #{_gaemf_forward_jit.2} parent=5 // pred_fallthru
        _
      %p682 = scmp.le.s32.totalorder 2, %s16
      // Predicated region
      $region49: #{_gaemf_forward_jit.2} parent=5 // pred_check
        %p683 = pneg %p682
      $region50: #{_gaemf_forward_jit.2} parent=5 // pred_check_branch
        %685 = sbr.rel (%p683) target = $region52
      $region51: #{_gaemf_forward_jit.2} parent=5 // pred_region
        %s686 = ssub.s32 %s16, 2
        // Predicated region
        $region53: #{_gaemf_forward_jit.2} parent=51 // pred_check
          %p687 = pneg %p113
        $region54: #{_gaemf_forward_jit.2} parent=51 // pred_check_branch
          %689 = sbr.rel (%p687) target = $region56
        $region55: #{_gaemf_forward_jit.2} parent=51 // pred_region
          %s690 = sand.u32 %s98, 1
          %s691 = scalar_lea.sflag [#allocation4], %s690
          %s692 = sand.u32 %s98, 1
          %s693 = smul.addr %s692, 128
          %s694 = scalar_lea.vmem [#allocation8], %s693
          %695 = dma.done %s691, 2048
        $region56: #{_gaemf_forward_jit.2} parent=51 // pred_fallthru
          _
      $region52: #{_gaemf_forward_jit.2} parent=5 // pred_fallthru
        _
    $region6: #{_gaemf_forward_jit.2} parent=1 // loop_footer
      %s20 = sadd.s32 1, %s16
    $region7: #{_gaemf_forward_jit.2} parent=1 // loop_footer_branch
      %15 = sbr.rel target = $region3
    $region8: #{_gaemf_forward_jit.2} parent=1 // loop_exit
      _
    %696 = vsyncpa [#allocation3], 1
    %s697 = scalar_lea.sflag [#allocation3], 1
    %698 = vsyncpa %s697, 1
    %699 = vsyncpa [#allocation6], 1
    %700 = vsyncpa [#allocation4], 1
    %s701 = scalar_lea.sflag [#allocation4], 1
    %702 = vsyncpa %s701, 1

</llo_original>
